<compile_context>
chip_gen: v6e
topology: v6e:2x2x1
jax: 0.10.0
libtpu: 0.0.40
codegen_flags: <defaults>
</compile_context>

<pallas_src>
import jax
import jax.numpy as jnp
from jax import lax
from jax.experimental import pallas as pl
from jax.experimental.pallas import tpu as pltpu

_INV_SQRT2 = 0.7071067811865476
_LN_EPS = 1e-5


def _erf(x):
    # Abramowitz & Stegun 7.1.26 polynomial erf (max abs err ~1.5e-7, i.e. f32
    # roundoff). exp() goes to the EUP; runs once on the vectorized tail tile.
    a1, a2, a3, a4, a5 = 0.254829592, -0.284496736, 1.421413741, -1.453152027, 1.061405429
    p = 0.3275911
    ax = jnp.abs(x)
    t = 1.0 / (1.0 + p * ax)
    poly = ((((a5 * t + a4) * t + a3) * t + a2) * t + a1) * t
    y = 1.0 - poly * jnp.exp(-ax * ax)
    return jnp.where(x >= 0.0, y, -y)


def lstm_bi_kernel(x2_ref,        # (T, BB, 2D)  [x(t) | x(T-1-t)] lane-concat, batch padded
                   wih_ref,       # (2D, 8H)     input proj, interleaved gate cols
                   b_ref,         # (1, 8H)      (bih+bhh), interleaved gate cols
                   whh_ref,       # (2H, 8H)     recurrent weights, rows [h_f|h_b]
                   ln_g_ref, ln_b_ref,    # (1, 2H) LayerNorm affine
                   wlin_ref, blin_ref,    # (2H, H), (1, H)
                   out_ref,       # (T, BB, H)
                   px_ref,        # VMEM scratch (T, BB, 8H): hoisted input projections
                   hf_ref, hb_ref):       # VMEM scratch (T, BB, H): per-time hidden states
    T, BB, D2 = x2_ref.shape
    D = D2 // 2
    H = whh_ref.shape[0] // 2
    G2 = 2 * H
    TB = T * BB

    # ---- Stage 1: hoisted input projections for BOTH directions in one MXU matmul ----
    # Because x2 carries [x(t) | x(T-1-t)], px_ref[s] already holds the forward
    # gates for time s and the backward gates for time T-1-s, in the interleaved
    # column order -- so the recurrence needs exactly one scratch read per step.
    px = (jnp.dot(x2_ref[...].reshape(TB, D2), wih_ref[...],
                  preferred_element_type=jnp.float32) + b_ref[...])      # (TB, 8H)
    px_ref[...] = px.reshape(T, BB, 8 * H)

    whh = whh_ref[...]                                                   # hoisted

    # ---- Stage 2: fused fwd+bwd recurrence, one matmul per step, no concats ----
    # v5e note: two separate (BB,H)@(H,4H) dots per direction would skip the
    # zero off-diagonal MACs of `whh` on the 128-wide MXU.
    def step(s, carry):
        h, c = carry                                  # both (BB, 2H) = [fwd | bwd]
        tb = T - 1 - s
        rec = jnp.dot(h, whh, preferred_element_type=jnp.float32)        # (BB, 8H)
        g = px_ref[s] + rec
        i = jax.nn.sigmoid(g[:, 0 * G2:1 * G2])       # [i_f | i_b]
        f = jax.nn.sigmoid(g[:, 1 * G2:2 * G2])       # [f_f | f_b]
        gg = jnp.tanh(g[:, 2 * G2:3 * G2])            # [g_f | g_b]
        o = jax.nn.sigmoid(g[:, 3 * G2:4 * G2])       # [o_f | o_b]
        c = f * c + i * gg
        h = o * jnp.tanh(c)                           # (BB, 2H), already LHS layout
        hf_ref[s] = h[:, :H]                          # fwd hidden at time s
        hb_ref[tb] = h[:, H:]                         # bwd hidden at time T-1-s
        return (h, c)

    h0 = jnp.zeros((BB, 2 * H), jnp.float32)
    c0 = jnp.zeros((BB, 2 * H), jnp.float32)
    lax.fori_loop(0, T, step, (h0, c0), unroll=min(T, 8))   # bounded unroll

    # ---- Stage 3: vectorized LayerNorm + Linear + GELU + residual (all T*BB rows) ----
    # TODO(synk): nn.Dropout()(out) in the reference forward runs in train mode
    # (stochastic); implemented here as identity (inference semantics).
    hf = hf_ref[...].reshape(TB, H)
    hb = hb_ref[...].reshape(TB, H)
    hcat = jnp.concatenate([hf, hb], axis=-1)                            # (TB, 2H)
    mean = jnp.mean(hcat, axis=-1, keepdims=True)
    ctr = hcat - mean
    var = jnp.mean(ctr * ctr, axis=-1, keepdims=True)
    normed = ctr * lax.rsqrt(var + _LN_EPS) * ln_g_ref[...] + ln_b_ref[...]
    lin = (jnp.dot(normed, wlin_ref[...], preferred_element_type=jnp.float32)
           + blin_ref[...])                                              # (TB, H)
    gelu = 0.5 * lin * (1.0 + _erf(lin * _INV_SQRT2))                    # exact-GELU (erf)
    res = x2_ref[...][..., :D].reshape(TB, D)                            # original input
    out_ref[...] = (gelu + res).reshape(T, BB, H).astype(out_ref.dtype)


def init_params(key, input_dim, hidden_dim):
    """Deterministic parameter init matching the PyTorch module's shapes."""
    H, D = hidden_dim, input_dim
    bound = 1.0 / float(H) ** 0.5
    ks = jax.random.split(key, 10)
    u = lambda k, shape: jax.random.uniform(k, shape, jnp.float32, -bound, bound)
    return dict(
        wih_f=u(ks[0], (4 * H, D)), whh_f=u(ks[1], (4 * H, H)),
        bih_f=u(ks[2], (4 * H,)), bhh_f=u(ks[3], (4 * H,)),
        wih_b=u(ks[4], (4 * H, D)), whh_b=u(ks[5], (4 * H, H)),
        bih_b=u(ks[6], (4 * H,)), bhh_b=u(ks[7], (4 * H,)),
        ln_g=jnp.ones((2 * H,), jnp.float32), ln_b=jnp.zeros((2 * H,), jnp.float32),
        wlin=u(ks[8], (H, 2 * H)), blin=u(ks[9], (H,)),
    )


def _interleave_gate_cols(a, b, H):
    """a, b: (R, 4H) in gate order [i,f,g,o] -> (R, 8H) cols [i_a i_b f_a f_b g_a g_b o_a o_b]."""
    R = a.shape[0]
    st = jnp.stack([a.reshape(R, 4, H), b.reshape(R, 4, H)], axis=2)     # (R, 4, 2, H)
    return st.reshape(R, 8 * H)


def pack_params(params):
    """One-time weight packing (call once, outside the per-call forward)."""
    H = params["whh_f"].shape[1]
    D = params["wih_f"].shape[1]
    z_w = jnp.zeros((D, 4 * H), jnp.float32)
    z_h = jnp.zeros((H, 4 * H), jnp.float32)
    # Input projection: rows 0:D act on x(t) (fwd gate cols), rows D:2D act on
    # x(T-1-t) (bwd gate cols).
    wih = jnp.concatenate([
        _interleave_gate_cols(params["wih_f"].T, z_w, H),
        _interleave_gate_cols(z_w, params["wih_b"].T, H)], axis=0)       # (2D, 8H)
    # Recurrent weights: rows 0:H act on h_f, rows H:2H on h_b.
    whh = jnp.concatenate([
        _interleave_gate_cols(params["whh_f"].T, z_h, H),
        _interleave_gate_cols(z_h, params["whh_b"].T, H)], axis=0)       # (2H, 8H)
    b = _interleave_gate_cols((params["bih_f"] + params["bhh_f"]).reshape(1, 4 * H),
                              (params["bih_b"] + params["bhh_b"]).reshape(1, 4 * H),
                              H)                                          # (1, 8H)
    return dict(
        wih=wih, b=b, whh=whh,
        ln_g=params["ln_g"].reshape(1, 2 * H),
        ln_b=params["ln_b"].reshape(1, 2 * H),
        wlin_t=params["wlin"].T,                                          # (2H, H)
        blin=params["blin"].reshape(1, H),
    )


@jax.jit
def lstm_bi_forward(x, packed):
    # x is (B, T, D) batch_first (PyTorch convention); kernel is time-major with
    # the batch padded to a sublane-aligned block BB (<= 128 rows per program).
    B, T, D = x.shape
    H = packed["wlin_t"].shape[1]
    assert D == H, "residual `out + input` requires input_dim == hidden_dim"

    BP0 = -(-B // 8) * 8                         # pad batch to sublane multiple
    BB = min(BP0, 128)                           # batch block (MXU-row fill)
    NB = -(-BP0 // BB)                           # grid (parallel across v7x cores)
    BP = NB * BB

    x_tm = jnp.transpose(x, (1, 0, 2)).astype(jnp.float32)               # (T, B, D)
    x_tm = jnp.pad(x_tm, ((0, 0), (0, BP - B), (0, 0)))                   # (T, BP, D)
    # [x(t) | x(T-1-t)]: lets Stage 1 emit bwd-gate preactivations already
    # time-aligned with the fused recurrence loop index.
    x2 = jnp.concatenate([x_tm, x_tm[::-1]], axis=-1)                     # (T, BP, 2D)

    # VMEM budget: scratch + double-buffered I/O blocks + weights; cap at v7x's
    # 64 MiB physical per-core VMEM, floor at the 32 MiB default.
    vmem_needed = 4 * (T * BB * (8 * H + 2 * H)
                       + 2 * T * BB * (2 * D) + 2 * T * BB * H
                       + 2 * (2 * D * 8 * H + 2 * H * 8 * H + 2 * H * H + 16 * H))
    vmem_limit = int(min(64 * 1024 * 1024, max(32 * 1024 * 1024, 2 * vmem_needed)))

    grid_spec = pltpu.PrefetchScalarGridSpec(
        num_scalar_prefetch=0,
        grid=(NB,),
        in_specs=[
            pl.BlockSpec((T, BB, 2 * D), lambda i: (0, i, 0)),
            pl.BlockSpec((2 * D, 8 * H), lambda i: (0, 0)),
            pl.BlockSpec((1, 8 * H), lambda i: (0, 0)),
            pl.BlockSpec((2 * H, 8 * H), lambda i: (0, 0)),
            pl.BlockSpec((1, 2 * H), lambda i: (0, 0)),
            pl.BlockSpec((1, 2 * H), lambda i: (0, 0)),
            pl.BlockSpec((2 * H, H), lambda i: (0, 0)),
            pl.BlockSpec((1, H), lambda i: (0, 0)),
        ],
        out_specs=pl.BlockSpec((T, BB, H), lambda i: (0, i, 0)),
        scratch_shapes=[
            pltpu.VMEM((T, BB, 8 * H), jnp.float32),   # merged input projections (both dirs)
            pltpu.VMEM((T, BB, H), jnp.float32),       # fwd hidden states
            pltpu.VMEM((T, BB, H), jnp.float32),       # bwd hidden states
        ],
    )
    out_tm = pl.pallas_call(
        lstm_bi_kernel,
        out_shape=jax.ShapeDtypeStruct((T, BP, H), jnp.float32),
        grid_spec=grid_spec,
        compiler_params=pltpu.CompilerParams(
            dimension_semantics=("parallel",),
            vmem_limit_bytes=vmem_limit,
        ),
    )(x2, packed["wih"], packed["b"], packed["whh"],
      packed["ln_g"], packed["ln_b"], packed["wlin_t"], packed["blin"])
    return jnp.transpose(out_tm[:, :B, :], (1, 0, 2))                     # back to (B, T, H)


def lstm_bi_reference(x, params):
    """Pure-JAX reference (no Pallas) for a correctness sanity check."""
    B, T, D = x.shape
    H = params["whh_f"].shape[1]
    hp = lax.Precision.HIGHEST

    def direction(xseq, wih, whh, bias):
        def step(carry, x_t):
            h, c = carry
            z = (jnp.dot(x_t, wih.T, precision=hp)
                 + jnp.dot(h, whh.T, precision=hp) + bias)
            i = jax.nn.sigmoid(z[:, :H]); f = jax.nn.sigmoid(z[:, H:2 * H])
            g = jnp.tanh(z[:, 2 * H:3 * H]); o = jax.nn.sigmoid(z[:, 3 * H:])
            c = f * c + i * g
            h = o * jnp.tanh(c)
            return (h, c), h
        init = (jnp.zeros((B, H), jnp.float32), jnp.zeros((B, H), jnp.float32))
        _, hs = lax.scan(step, init, xseq)
        return hs                                                         # (T, B, H)

    x_tm = jnp.transpose(x, (1, 0, 2)).astype(jnp.float32)
    hf = direction(x_tm, params["wih_f"], params["whh_f"], params["bih_f"] + params["bhh_f"])
    hb = direction(x_tm[::-1], params["wih_b"], params["whh_b"],
                   params["bih_b"] + params["bhh_b"])[::-1]
    out = jnp.concatenate([hf, hb], axis=-1)                              # (T, B, 2H)
    mean = out.mean(-1, keepdims=True)
    var = ((out - mean) ** 2).mean(-1, keepdims=True)
    out = (out - mean) / jnp.sqrt(var + _LN_EPS) * params["ln_g"] + params["ln_b"]
    lin = jnp.dot(out, params["wlin"].T, precision=hp) + params["blin"]
    gelu = 0.5 * lin * (1.0 + lax.erf(lin * _INV_SQRT2))
    res = gelu + x_tm
    return jnp.transpose(res, (1, 0, 2))


if __name__ == "__main__":
    B, T, D, H = 2, 8, 32, 32   # batch, seq, input_dim == hidden_dim
    key = jax.random.PRNGKey(0)
    kx, kp = jax.random.split(key)
    x = jax.random.normal(kx, (B, T, D), jnp.float32)
    params = init_params(kp, D, H)
    packed = pack_params(params)            # one-time weight packing (outside forward)

    out = lstm_bi_forward(x, packed)
    out = jax.block_until_ready(out)
    assert out.shape == (B, T, H)
    assert bool(jnp.all(jnp.isfinite(out)))

    ref = lstm_bi_reference(x, params)
    max_err = float(jnp.max(jnp.abs(out - ref)))
    assert max_err < 5e-3, f"kernel/reference mismatch: max abs err {max_err}"
    print("KERNEL_OK")
</pallas_src>

<mosaic_0001>
module attributes {stable_mosaic.version = 11 : i64} {
  func.func @lstm_bi_kernel(%arg0: i32, %arg1: memref<8x8x64xf32, #tpu.memory_space<vmem>>, %arg2: memref<64x256xf32, #tpu.memory_space<vmem>>, %arg3: memref<1x256xf32, #tpu.memory_space<vmem>>, %arg4: memref<64x256xf32, #tpu.memory_space<vmem>>, %arg5: memref<1x64xf32, #tpu.memory_space<vmem>>, %arg6: memref<1x64xf32, #tpu.memory_space<vmem>>, %arg7: memref<64x32xf32, #tpu.memory_space<vmem>>, %arg8: memref<1x32xf32, #tpu.memory_space<vmem>>, %arg9: memref<8x8x32xf32, #tpu.memory_space<vmem>>, %arg10: memref<8x8x256xf32, #tpu.memory_space<vmem>>, %arg11: memref<8x8x32xf32, #tpu.memory_space<vmem>>, %arg12: memref<8x8x32xf32, #tpu.memory_space<vmem>>) attributes {dimension_semantics = [#tpu.dimension_semantics<parallel>], iteration_bounds = array<i64: 1>, scalar_prefetch = 0 : i64, scratch_operands = 3 : i64, tpu.core_type = #tpu.core_type<tc>, window_params = [{transform_indices = @transform_0, window_bounds = array<i64: 8, 8, 64>}, {pipeline_mode = #tpu.pipeline_mode<synchronous>, transform_indices = @transform_1, window_bounds = array<i64: 64, 256>}, {pipeline_mode = #tpu.pipeline_mode<synchronous>, transform_indices = @transform_2, window_bounds = array<i64: 1, 256>}, {pipeline_mode = #tpu.pipeline_mode<synchronous>, transform_indices = @transform_3, window_bounds = array<i64: 64, 256>}, {pipeline_mode = #tpu.pipeline_mode<synchronous>, transform_indices = @transform_4, window_bounds = array<i64: 1, 64>}, {pipeline_mode = #tpu.pipeline_mode<synchronous>, transform_indices = @transform_5, window_bounds = array<i64: 1, 64>}, {pipeline_mode = #tpu.pipeline_mode<synchronous>, transform_indices = @transform_6, window_bounds = array<i64: 64, 32>}, {pipeline_mode = #tpu.pipeline_mode<synchronous>, transform_indices = @transform_7, window_bounds = array<i64: 1, 32>}, {transform_indices = @transform_8, window_bounds = array<i64: 8, 8, 32>}]} {
    %c0 = arith.constant 0 : index
    %c0_0 = arith.constant 0 : index
    %c0_1 = arith.constant 0 : index
    %0 = vector.load %arg1[%c0, %c0_0, %c0_1] : memref<8x8x64xf32, #tpu.memory_space<vmem>>, vector<8x8x64xf32>
    %1 = vector.shape_cast %0 : vector<8x8x64xf32> to vector<64x64xf32>
    %c0_2 = arith.constant 0 : index
    %c0_3 = arith.constant 0 : index
    %2 = vector.load %arg2[%c0_2, %c0_3] : memref<64x256xf32, #tpu.memory_space<vmem>>, vector<64x256xf32>
    %cst = arith.constant dense<0.000000e+00> : vector<64x256xf32>
    %3 = tpu.matmul %1, %2, %cst {dimension_numbers = #tpu.dot_dimension_numbers<[1], [0], [0], [1], [0, 0, 1, 1], [], []>} : vector<64x64xf32>, vector<64x256xf32>, vector<64x256xf32> -> vector<64x256xf32>
    %c0_4 = arith.constant 0 : index
    %c0_5 = arith.constant 0 : index
    %4 = vector.load %arg3[%c0_4, %c0_5] : memref<1x256xf32, #tpu.memory_space<vmem>>, vector<1x256xf32>
    %5 = vector.broadcast %4 : vector<1x256xf32> to vector<64x256xf32>
    %6 = arith.addf %3, %5 : vector<64x256xf32>
    %7 = vector.shape_cast %6 : vector<64x256xf32> to vector<8x8x256xf32>
    %c0_6 = arith.constant 0 : index
    %c0_7 = arith.constant 0 : index
    %c0_8 = arith.constant 0 : index
    %8 = vector.load %arg10[%c0_6, %c0_7, %c0_8] : memref<8x8x256xf32, #tpu.memory_space<vmem>>, vector<8x8x256xf32>
    tpu.vector_store %arg10[%c0_6, %c0_7, %c0_8], %7 {strides = array<i32>} : memref<8x8x256xf32, #tpu.memory_space<vmem>>, vector<8x8x256xf32>,
    %c0_9 = arith.constant 0 : index
    %c0_10 = arith.constant 0 : index
    %9 = vector.load %arg4[%c0_9, %c0_10] : memref<64x256xf32, #tpu.memory_space<vmem>>, vector<64x256xf32>
    %cst_11 = arith.constant 0.000000e+00 : f32
    %10 = vector.broadcast %cst_11 : f32 to vector<8x64xf32>
    %cst_12 = arith.constant 0.000000e+00 : f32
    %11 = vector.broadcast %cst_12 : f32 to vector<8x64xf32>
    %c0_i32 = arith.constant 0 : i32
    %c7_i32 = arith.constant 7 : i32
    %12 = arith.subi %c7_i32, %c0_i32 : i32
    %cst_13 = arith.constant dense<0.000000e+00> : vector<8x256xf32>
    %13 = tpu.matmul %10, %9, %cst_13 {dimension_numbers = #tpu.dot_dimension_numbers<[1], [0], [0], [1], [0, 0, 1, 1], [], []>} : vector<8x64xf32>, vector<64x256xf32>, vector<8x256xf32> -> vector<8x256xf32>
    %14 = arith.index_cast %c0_i32 : i32 to index
    %c0_14 = arith.constant 0 : index
    %c0_15 = arith.constant 0 : index
    %15 = vector.load %arg10[%14, %c0_14, %c0_15] : memref<8x8x256xf32, #tpu.memory_space<vmem>>, vector<1x8x256xf32>
    %16 = vector.shape_cast %15 : vector<1x8x256xf32> to vector<8x256xf32>
    %17 = arith.addf %16, %13 : vector<8x256xf32>
    %18 = vector.extract_strided_slice %17 {offsets = [0, 0], sizes = [8, 64], strides = [1, 1]} : vector<8x256xf32> to vector<8x64xf32>
    %19 = arith.negf %18 : vector<8x64xf32>
    %20 = math.exp %19 : vector<8x64xf32>
    %cst_16 = arith.constant 1.000000e+00 : f32
    %21 = vector.broadcast %cst_16 : f32 to vector<8x64xf32>
    %22 = arith.addf %21, %20 : vector<8x64xf32>
    %23 = arith.divf %21, %22 : vector<8x64xf32>
    %24 = vector.extract_strided_slice %17 {offsets = [0, 64], sizes = [8, 64], strides = [1, 1]} : vector<8x256xf32> to vector<8x64xf32>
    %25 = arith.negf %24 : vector<8x64xf32>
    %26 = math.exp %25 : vector<8x64xf32>
    %cst_17 = arith.constant 1.000000e+00 : f32
    %27 = vector.broadcast %cst_17 : f32 to vector<8x64xf32>
    %28 = arith.addf %27, %26 : vector<8x64xf32>
    %29 = arith.divf %27, %28 : vector<8x64xf32>
    %30 = vector.extract_strided_slice %17 {offsets = [0, 128], sizes = [8, 64], strides = [1, 1]} : vector<8x256xf32> to vector<8x64xf32>
    %31 = math.tanh %30 : vector<8x64xf32>
    %32 = vector.extract_strided_slice %17 {offsets = [0, 192], sizes = [8, 64], strides = [1, 1]} : vector<8x256xf32> to vector<8x64xf32>
    %33 = arith.negf %32 : vector<8x64xf32>
    %34 = math.exp %33 : vector<8x64xf32>
    %cst_18 = arith.constant 1.000000e+00 : f32
    %35 = vector.broadcast %cst_18 : f32 to vector<8x64xf32>
    %36 = arith.addf %35, %34 : vector<8x64xf32>
    %37 = arith.divf %35, %36 : vector<8x64xf32>
    %38 = arith.mulf %29, %11 : vector<8x64xf32>
    %39 = arith.mulf %23, %31 : vector<8x64xf32>
    %40 = arith.addf %38, %39 : vector<8x64xf32>
    %41 = math.tanh %40 : vector<8x64xf32>
    %42 = arith.mulf %37, %41 : vector<8x64xf32>
    %43 = vector.extract_strided_slice %42 {offsets = [0, 0], sizes = [8, 32], strides = [1, 1]} : vector<8x64xf32> to vector<8x32xf32>
    %44 = arith.index_cast %c0_i32 : i32 to index
    %c0_19 = arith.constant 0 : index
    %c0_20 = arith.constant 0 : index
    %45 = vector.load %arg11[%44, %c0_19, %c0_20] : memref<8x8x32xf32, #tpu.memory_space<vmem>>, vector<1x8x32xf32>
    %46 = vector.shape_cast %45 : vector<1x8x32xf32> to vector<8x32xf32>
    %47 = vector.shape_cast %43 : vector<8x32xf32> to vector<1x8x32xf32>
    tpu.vector_store %arg11[%44, %c0_19, %c0_20], %47 {strides = array<i32>} : memref<8x8x32xf32, #tpu.memory_space<vmem>>, vector<1x8x32xf32>,
    %48 = vector.extract_strided_slice %42 {offsets = [0, 32], sizes = [8, 32], strides = [1, 1]} : vector<8x64xf32> to vector<8x32xf32>
    %49 = arith.index_cast %12 : i32 to index
    %c0_21 = arith.constant 0 : index
    %c0_22 = arith.constant 0 : index
    %50 = vector.load %arg12[%49, %c0_21, %c0_22] : memref<8x8x32xf32, #tpu.memory_space<vmem>>, vector<1x8x32xf32>
    %51 = vector.shape_cast %50 : vector<1x8x32xf32> to vector<8x32xf32>
    %52 = vector.shape_cast %48 : vector<8x32xf32> to vector<1x8x32xf32>
    tpu.vector_store %arg12[%49, %c0_21, %c0_22], %52 {strides = array<i32>} : memref<8x8x32xf32, #tpu.memory_space<vmem>>, vector<1x8x32xf32>,
    %c1_i32 = arith.constant 1 : i32
    %c7_i32_23 = arith.constant 7 : i32
    %53 = arith.subi %c7_i32_23, %c1_i32 : i32
    %cst_24 = arith.constant dense<0.000000e+00> : vector<8x256xf32>
    %54 = tpu.matmul %42, %9, %cst_24 {dimension_numbers = #tpu.dot_dimension_numbers<[1], [0], [0], [1], [0, 0, 1, 1], [], []>} : vector<8x64xf32>, vector<64x256xf32>, vector<8x256xf32> -> vector<8x256xf32>
    %55 = arith.index_cast %c1_i32 : i32 to index
    %c0_25 = arith.constant 0 : index
    %c0_26 = arith.constant 0 : index
    %56 = vector.load %arg10[%55, %c0_25, %c0_26] : memref<8x8x256xf32, #tpu.memory_space<vmem>>, vector<1x8x256xf32>
    %57 = vector.shape_cast %56 : vector<1x8x256xf32> to vector<8x256xf32>
    %58 = arith.addf %57, %54 : vector<8x256xf32>
    %59 = vector.extract_strided_slice %58 {offsets = [0, 0], sizes = [8, 64], strides = [1, 1]} : vector<8x256xf32> to vector<8x64xf32>
    %60 = arith.negf %59 : vector<8x64xf32>
    %61 = math.exp %60 : vector<8x64xf32>
    %cst_27 = arith.constant 1.000000e+00 : f32
    %62 = vector.broadcast %cst_27 : f32 to vector<8x64xf32>
    %63 = arith.addf %62, %61 : vector<8x64xf32>
    %64 = arith.divf %62, %63 : vector<8x64xf32>
    %65 = vector.extract_strided_slice %58 {offsets = [0, 64], sizes = [8, 64], strides = [1, 1]} : vector<8x256xf32> to vector<8x64xf32>
    %66 = arith.negf %65 : vector<8x64xf32>
    %67 = math.exp %66 : vector<8x64xf32>
    %cst_28 = arith.constant 1.000000e+00 : f32
    %68 = vector.broadcast %cst_28 : f32 to vector<8x64xf32>
    %69 = arith.addf %68, %67 : vector<8x64xf32>
    %70 = arith.divf %68, %69 : vector<8x64xf32>
    %71 = vector.extract_strided_slice %58 {offsets = [0, 128], sizes = [8, 64], strides = [1, 1]} : vector<8x256xf32> to vector<8x64xf32>
    %72 = math.tanh %71 : vector<8x64xf32>
    %73 = vector.extract_strided_slice %58 {offsets = [0, 192], sizes = [8, 64], strides = [1, 1]} : vector<8x256xf32> to vector<8x64xf32>
    %74 = arith.negf %73 : vector<8x64xf32>
    %75 = math.exp %74 : vector<8x64xf32>
    %cst_29 = arith.constant 1.000000e+00 : f32
    %76 = vector.broadcast %cst_29 : f32 to vector<8x64xf32>
    %77 = arith.addf %76, %75 : vector<8x64xf32>
    %78 = arith.divf %76, %77 : vector<8x64xf32>
    %79 = arith.mulf %70, %40 : vector<8x64xf32>
    %80 = arith.mulf %64, %72 : vector<8x64xf32>
    %81 = arith.addf %79, %80 : vector<8x64xf32>
    %82 = math.tanh %81 : vector<8x64xf32>
    %83 = arith.mulf %78, %82 : vector<8x64xf32>
    %84 = vector.extract_strided_slice %83 {offsets = [0, 0], sizes = [8, 32], strides = [1, 1]} : vector<8x64xf32> to vector<8x32xf32>
    %85 = arith.index_cast %c1_i32 : i32 to index
    %c0_30 = arith.constant 0 : index
    %c0_31 = arith.constant 0 : index
    %86 = vector.load %arg11[%85, %c0_30, %c0_31] : memref<8x8x32xf32, #tpu.memory_space<vmem>>, vector<1x8x32xf32>
    %87 = vector.shape_cast %86 : vector<1x8x32xf32> to vector<8x32xf32>
    %88 = vector.shape_cast %84 : vector<8x32xf32> to vector<1x8x32xf32>
    tpu.vector_store %arg11[%85, %c0_30, %c0_31], %88 {strides = array<i32>} : memref<8x8x32xf32, #tpu.memory_space<vmem>>, vector<1x8x32xf32>,
    %89 = vector.extract_strided_slice %83 {offsets = [0, 32], sizes = [8, 32], strides = [1, 1]} : vector<8x64xf32> to vector<8x32xf32>
    %90 = arith.index_cast %53 : i32 to index
    %c0_32 = arith.constant 0 : index
    %c0_33 = arith.constant 0 : index
    %91 = vector.load %arg12[%90, %c0_32, %c0_33] : memref<8x8x32xf32, #tpu.memory_space<vmem>>, vector<1x8x32xf32>
    %92 = vector.shape_cast %91 : vector<1x8x32xf32> to vector<8x32xf32>
    %93 = vector.shape_cast %89 : vector<8x32xf32> to vector<1x8x32xf32>
    tpu.vector_store %arg12[%90, %c0_32, %c0_33], %93 {strides = array<i32>} : memref<8x8x32xf32, #tpu.memory_space<vmem>>, vector<1x8x32xf32>,
    %c2_i32 = arith.constant 2 : i32
    %c7_i32_34 = arith.constant 7 : i32
    %94 = arith.subi %c7_i32_34, %c2_i32 : i32
    %cst_35 = arith.constant dense<0.000000e+00> : vector<8x256xf32>
    %95 = tpu.matmul %83, %9, %cst_35 {dimension_numbers = #tpu.dot_dimension_numbers<[1], [0], [0], [1], [0, 0, 1, 1], [], []>} : vector<8x64xf32>, vector<64x256xf32>, vector<8x256xf32> -> vector<8x256xf32>
    %96 = arith.index_cast %c2_i32 : i32 to index
    %c0_36 = arith.constant 0 : index
    %c0_37 = arith.constant 0 : index
    %97 = vector.load %arg10[%96, %c0_36, %c0_37] : memref<8x8x256xf32, #tpu.memory_space<vmem>>, vector<1x8x256xf32>
    %98 = vector.shape_cast %97 : vector<1x8x256xf32> to vector<8x256xf32>
    %99 = arith.addf %98, %95 : vector<8x256xf32>
    %100 = vector.extract_strided_slice %99 {offsets = [0, 0], sizes = [8, 64], strides = [1, 1]} : vector<8x256xf32> to vector<8x64xf32>
    %101 = arith.negf %100 : vector<8x64xf32>
    %102 = math.exp %101 : vector<8x64xf32>
    %cst_38 = arith.constant 1.000000e+00 : f32
    %103 = vector.broadcast %cst_38 : f32 to vector<8x64xf32>
    %104 = arith.addf %103, %102 : vector<8x64xf32>
    %105 = arith.divf %103, %104 : vector<8x64xf32>
    %106 = vector.extract_strided_slice %99 {offsets = [0, 64], sizes = [8, 64], strides = [1, 1]} : vector<8x256xf32> to vector<8x64xf32>
    %107 = arith.negf %106 : vector<8x64xf32>
    %108 = math.exp %107 : vector<8x64xf32>
    %cst_39 = arith.constant 1.000000e+00 : f32
    %109 = vector.broadcast %cst_39 : f32 to vector<8x64xf32>
    %110 = arith.addf %109, %108 : vector<8x64xf32>
    %111 = arith.divf %109, %110 : vector<8x64xf32>
    %112 = vector.extract_strided_slice %99 {offsets = [0, 128], sizes = [8, 64], strides = [1, 1]} : vector<8x256xf32> to vector<8x64xf32>
    %113 = math.tanh %112 : vector<8x64xf32>
    %114 = vector.extract_strided_slice %99 {offsets = [0, 192], sizes = [8, 64], strides = [1, 1]} : vector<8x256xf32> to vector<8x64xf32>
    %115 = arith.negf %114 : vector<8x64xf32>
    %116 = math.exp %115 : vector<8x64xf32>
    %cst_40 = arith.constant 1.000000e+00 : f32
    %117 = vector.broadcast %cst_40 : f32 to vector<8x64xf32>
    %118 = arith.addf %117, %116 : vector<8x64xf32>
    %119 = arith.divf %117, %118 : vector<8x64xf32>
    %120 = arith.mulf %111, %81 : vector<8x64xf32>
    %121 = arith.mulf %105, %113 : vector<8x64xf32>
    %122 = arith.addf %120, %121 : vector<8x64xf32>
    %123 = math.tanh %122 : vector<8x64xf32>
    %124 = arith.mulf %119, %123 : vector<8x64xf32>
    %125 = vector.extract_strided_slice %124 {offsets = [0, 0], sizes = [8, 32], strides = [1, 1]} : vector<8x64xf32> to vector<8x32xf32>
    %126 = arith.index_cast %c2_i32 : i32 to index
    %c0_41 = arith.constant 0 : index
    %c0_42 = arith.constant 0 : index
    %127 = vector.load %arg11[%126, %c0_41, %c0_42] : memref<8x8x32xf32, #tpu.memory_space<vmem>>, vector<1x8x32xf32>
    %128 = vector.shape_cast %127 : vector<1x8x32xf32> to vector<8x32xf32>
    %129 = vector.shape_cast %125 : vector<8x32xf32> to vector<1x8x32xf32>
    tpu.vector_store %arg11[%126, %c0_41, %c0_42], %129 {strides = array<i32>} : memref<8x8x32xf32, #tpu.memory_space<vmem>>, vector<1x8x32xf32>,
    %130 = vector.extract_strided_slice %124 {offsets = [0, 32], sizes = [8, 32], strides = [1, 1]} : vector<8x64xf32> to vector<8x32xf32>
    %131 = arith.index_cast %94 : i32 to index
    %c0_43 = arith.constant 0 : index
    %c0_44 = arith.constant 0 : index
    %132 = vector.load %arg12[%131, %c0_43, %c0_44] : memref<8x8x32xf32, #tpu.memory_space<vmem>>, vector<1x8x32xf32>
    %133 = vector.shape_cast %132 : vector<1x8x32xf32> to vector<8x32xf32>
    %134 = vector.shape_cast %130 : vector<8x32xf32> to vector<1x8x32xf32>
    tpu.vector_store %arg12[%131, %c0_43, %c0_44], %134 {strides = array<i32>} : memref<8x8x32xf32, #tpu.memory_space<vmem>>, vector<1x8x32xf32>,
    %c3_i32 = arith.constant 3 : i32
    %c7_i32_45 = arith.constant 7 : i32
    %135 = arith.subi %c7_i32_45, %c3_i32 : i32
    %cst_46 = arith.constant dense<0.000000e+00> : vector<8x256xf32>
    %136 = tpu.matmul %124, %9, %cst_46 {dimension_numbers = #tpu.dot_dimension_numbers<[1], [0], [0], [1], [0, 0, 1, 1], [], []>} : vector<8x64xf32>, vector<64x256xf32>, vector<8x256xf32> -> vector<8x256xf32>
    %137 = arith.index_cast %c3_i32 : i32 to index
    %c0_47 = arith.constant 0 : index
    %c0_48 = arith.constant 0 : index
    %138 = vector.load %arg10[%137, %c0_47, %c0_48] : memref<8x8x256xf32, #tpu.memory_space<vmem>>, vector<1x8x256xf32>
    %139 = vector.shape_cast %138 : vector<1x8x256xf32> to vector<8x256xf32>
    %140 = arith.addf %139, %136 : vector<8x256xf32>
    %141 = vector.extract_strided_slice %140 {offsets = [0, 0], sizes = [8, 64], strides = [1, 1]} : vector<8x256xf32> to vector<8x64xf32>
    %142 = arith.negf %141 : vector<8x64xf32>
    %143 = math.exp %142 : vector<8x64xf32>
    %cst_49 = arith.constant 1.000000e+00 : f32
    %144 = vector.broadcast %cst_49 : f32 to vector<8x64xf32>
    %145 = arith.addf %144, %143 : vector<8x64xf32>
    %146 = arith.divf %144, %145 : vector<8x64xf32>
    %147 = vector.extract_strided_slice %140 {offsets = [0, 64], sizes = [8, 64], strides = [1, 1]} : vector<8x256xf32> to vector<8x64xf32>
    %148 = arith.negf %147 : vector<8x64xf32>
    %149 = math.exp %148 : vector<8x64xf32>
    %cst_50 = arith.constant 1.000000e+00 : f32
    %150 = vector.broadcast %cst_50 : f32 to vector<8x64xf32>
    %151 = arith.addf %150, %149 : vector<8x64xf32>
    %152 = arith.divf %150, %151 : vector<8x64xf32>
    %153 = vector.extract_strided_slice %140 {offsets = [0, 128], sizes = [8, 64], strides = [1, 1]} : vector<8x256xf32> to vector<8x64xf32>
    %154 = math.tanh %153 : vector<8x64xf32>
    %155 = vector.extract_strided_slice %140 {offsets = [0, 192], sizes = [8, 64], strides = [1, 1]} : vector<8x256xf32> to vector<8x64xf32>
    %156 = arith.negf %155 : vector<8x64xf32>
    %157 = math.exp %156 : vector<8x64xf32>
    %cst_51 = arith.constant 1.000000e+00 : f32
    %158 = vector.broadcast %cst_51 : f32 to vector<8x64xf32>
    %159 = arith.addf %158, %157 : vector<8x64xf32>
    %160 = arith.divf %158, %159 : vector<8x64xf32>
    %161 = arith.mulf %152, %122 : vector<8x64xf32>
    %162 = arith.mulf %146, %154 : vector<8x64xf32>
    %163 = arith.addf %161, %162 : vector<8x64xf32>
    %164 = math.tanh %163 : vector<8x64xf32>
    %165 = arith.mulf %160, %164 : vector<8x64xf32>
    %166 = vector.extract_strided_slice %165 {offsets = [0, 0], sizes = [8, 32], strides = [1, 1]} : vector<8x64xf32> to vector<8x32xf32>
    %167 = arith.index_cast %c3_i32 : i32 to index
    %c0_52 = arith.constant 0 : index
    %c0_53 = arith.constant 0 : index
    %168 = vector.load %arg11[%167, %c0_52, %c0_53] : memref<8x8x32xf32, #tpu.memory_space<vmem>>, vector<1x8x32xf32>
    %169 = vector.shape_cast %168 : vector<1x8x32xf32> to vector<8x32xf32>
    %170 = vector.shape_cast %166 : vector<8x32xf32> to vector<1x8x32xf32>
    tpu.vector_store %arg11[%167, %c0_52, %c0_53], %170 {strides = array<i32>} : memref<8x8x32xf32, #tpu.memory_space<vmem>>, vector<1x8x32xf32>,
    %171 = vector.extract_strided_slice %165 {offsets = [0, 32], sizes = [8, 32], strides = [1, 1]} : vector<8x64xf32> to vector<8x32xf32>
    %172 = arith.index_cast %135 : i32 to index
    %c0_54 = arith.constant 0 : index
    %c0_55 = arith.constant 0 : index
    %173 = vector.load %arg12[%172, %c0_54, %c0_55] : memref<8x8x32xf32, #tpu.memory_space<vmem>>, vector<1x8x32xf32>
    %174 = vector.shape_cast %173 : vector<1x8x32xf32> to vector<8x32xf32>
    %175 = vector.shape_cast %171 : vector<8x32xf32> to vector<1x8x32xf32>
    tpu.vector_store %arg12[%172, %c0_54, %c0_55], %175 {strides = array<i32>} : memref<8x8x32xf32, #tpu.memory_space<vmem>>, vector<1x8x32xf32>,
    %c4_i32 = arith.constant 4 : i32
    %c7_i32_56 = arith.constant 7 : i32
    %176 = arith.subi %c7_i32_56, %c4_i32 : i32
    %cst_57 = arith.constant dense<0.000000e+00> : vector<8x256xf32>
    %177 = tpu.matmul %165, %9, %cst_57 {dimension_numbers = #tpu.dot_dimension_numbers<[1], [0], [0], [1], [0, 0, 1, 1], [], []>} : vector<8x64xf32>, vector<64x256xf32>, vector<8x256xf32> -> vector<8x256xf32>
    %178 = arith.index_cast %c4_i32 : i32 to index
    %c0_58 = arith.constant 0 : index
    %c0_59 = arith.constant 0 : index
    %179 = vector.load %arg10[%178, %c0_58, %c0_59] : memref<8x8x256xf32, #tpu.memory_space<vmem>>, vector<1x8x256xf32>
    %180 = vector.shape_cast %179 : vector<1x8x256xf32> to vector<8x256xf32>
    %181 = arith.addf %180, %177 : vector<8x256xf32>
    %182 = vector.extract_strided_slice %181 {offsets = [0, 0], sizes = [8, 64], strides = [1, 1]} : vector<8x256xf32> to vector<8x64xf32>
    %183 = arith.negf %182 : vector<8x64xf32>
    %184 = math.exp %183 : vector<8x64xf32>
    %cst_60 = arith.constant 1.000000e+00 : f32
    %185 = vector.broadcast %cst_60 : f32 to vector<8x64xf32>
    %186 = arith.addf %185, %184 : vector<8x64xf32>
    %187 = arith.divf %185, %186 : vector<8x64xf32>
    %188 = vector.extract_strided_slice %181 {offsets = [0, 64], sizes = [8, 64], strides = [1, 1]} : vector<8x256xf32> to vector<8x64xf32>
    %189 = arith.negf %188 : vector<8x64xf32>
    %190 = math.exp %189 : vector<8x64xf32>
    %cst_61 = arith.constant 1.000000e+00 : f32
    %191 = vector.broadcast %cst_61 : f32 to vector<8x64xf32>
    %192 = arith.addf %191, %190 : vector<8x64xf32>
    %193 = arith.divf %191, %192 : vector<8x64xf32>
    %194 = vector.extract_strided_slice %181 {offsets = [0, 128], sizes = [8, 64], strides = [1, 1]} : vector<8x256xf32> to vector<8x64xf32>
    %195 = math.tanh %194 : vector<8x64xf32>
    %196 = vector.extract_strided_slice %181 {offsets = [0, 192], sizes = [8, 64], strides = [1, 1]} : vector<8x256xf32> to vector<8x64xf32>
    %197 = arith.negf %196 : vector<8x64xf32>
    %198 = math.exp %197 : vector<8x64xf32>
    %cst_62 = arith.constant 1.000000e+00 : f32
    %199 = vector.broadcast %cst_62 : f32 to vector<8x64xf32>
    %200 = arith.addf %199, %198 : vector<8x64xf32>
    %201 = arith.divf %199, %200 : vector<8x64xf32>
    %202 = arith.mulf %193, %163 : vector<8x64xf32>
    %203 = arith.mulf %187, %195 : vector<8x64xf32>
    %204 = arith.addf %202, %203 : vector<8x64xf32>
    %205 = math.tanh %204 : vector<8x64xf32>
    %206 = arith.mulf %201, %205 : vector<8x64xf32>
    %207 = vector.extract_strided_slice %206 {offsets = [0, 0], sizes = [8, 32], strides = [1, 1]} : vector<8x64xf32> to vector<8x32xf32>
    %208 = arith.index_cast %c4_i32 : i32 to index
    %c0_63 = arith.constant 0 : index
    %c0_64 = arith.constant 0 : index
    %209 = vector.load %arg11[%208, %c0_63, %c0_64] : memref<8x8x32xf32, #tpu.memory_space<vmem>>, vector<1x8x32xf32>
    %210 = vector.shape_cast %209 : vector<1x8x32xf32> to vector<8x32xf32>
    %211 = vector.shape_cast %207 : vector<8x32xf32> to vector<1x8x32xf32>
    tpu.vector_store %arg11[%208, %c0_63, %c0_64], %211 {strides = array<i32>} : memref<8x8x32xf32, #tpu.memory_space<vmem>>, vector<1x8x32xf32>,
    %212 = vector.extract_strided_slice %206 {offsets = [0, 32], sizes = [8, 32], strides = [1, 1]} : vector<8x64xf32> to vector<8x32xf32>
    %213 = arith.index_cast %176 : i32 to index
    %c0_65 = arith.constant 0 : index
    %c0_66 = arith.constant 0 : index
    %214 = vector.load %arg12[%213, %c0_65, %c0_66] : memref<8x8x32xf32, #tpu.memory_space<vmem>>, vector<1x8x32xf32>
    %215 = vector.shape_cast %214 : vector<1x8x32xf32> to vector<8x32xf32>
    %216 = vector.shape_cast %212 : vector<8x32xf32> to vector<1x8x32xf32>
    tpu.vector_store %arg12[%213, %c0_65, %c0_66], %216 {strides = array<i32>} : memref<8x8x32xf32, #tpu.memory_space<vmem>>, vector<1x8x32xf32>,
    %c5_i32 = arith.constant 5 : i32
    %c7_i32_67 = arith.constant 7 : i32
    %217 = arith.subi %c7_i32_67, %c5_i32 : i32
    %cst_68 = arith.constant dense<0.000000e+00> : vector<8x256xf32>
    %218 = tpu.matmul %206, %9, %cst_68 {dimension_numbers = #tpu.dot_dimension_numbers<[1], [0], [0], [1], [0, 0, 1, 1], [], []>} : vector<8x64xf32>, vector<64x256xf32>, vector<8x256xf32> -> vector<8x256xf32>
    %219 = arith.index_cast %c5_i32 : i32 to index
    %c0_69 = arith.constant 0 : index
    %c0_70 = arith.constant 0 : index
    %220 = vector.load %arg10[%219, %c0_69, %c0_70] : memref<8x8x256xf32, #tpu.memory_space<vmem>>, vector<1x8x256xf32>
    %221 = vector.shape_cast %220 : vector<1x8x256xf32> to vector<8x256xf32>
    %222 = arith.addf %221, %218 : vector<8x256xf32>
    %223 = vector.extract_strided_slice %222 {offsets = [0, 0], sizes = [8, 64], strides = [1, 1]} : vector<8x256xf32> to vector<8x64xf32>
    %224 = arith.negf %223 : vector<8x64xf32>
    %225 = math.exp %224 : vector<8x64xf32>
    %cst_71 = arith.constant 1.000000e+00 : f32
    %226 = vector.broadcast %cst_71 : f32 to vector<8x64xf32>
    %227 = arith.addf %226, %225 : vector<8x64xf32>
    %228 = arith.divf %226, %227 : vector<8x64xf32>
    %229 = vector.extract_strided_slice %222 {offsets = [0, 64], sizes = [8, 64], strides = [1, 1]} : vector<8x256xf32> to vector<8x64xf32>
    %230 = arith.negf %229 : vector<8x64xf32>
    %231 = math.exp %230 : vector<8x64xf32>
    %cst_72 = arith.constant 1.000000e+00 : f32
    %232 = vector.broadcast %cst_72 : f32 to vector<8x64xf32>
    %233 = arith.addf %232, %231 : vector<8x64xf32>
    %234 = arith.divf %232, %233 : vector<8x64xf32>
    %235 = vector.extract_strided_slice %222 {offsets = [0, 128], sizes = [8, 64], strides = [1, 1]} : vector<8x256xf32> to vector<8x64xf32>
    %236 = math.tanh %235 : vector<8x64xf32>
    %237 = vector.extract_strided_slice %222 {offsets = [0, 192], sizes = [8, 64], strides = [1, 1]} : vector<8x256xf32> to vector<8x64xf32>
    %238 = arith.negf %237 : vector<8x64xf32>
    %239 = math.exp %238 : vector<8x64xf32>
    %cst_73 = arith.constant 1.000000e+00 : f32
    %240 = vector.broadcast %cst_73 : f32 to vector<8x64xf32>
    %241 = arith.addf %240, %239 : vector<8x64xf32>
    %242 = arith.divf %240, %241 : vector<8x64xf32>
    %243 = arith.mulf %234, %204 : vector<8x64xf32>
    %244 = arith.mulf %228, %236 : vector<8x64xf32>
    %245 = arith.addf %243, %244 : vector<8x64xf32>
    %246 = math.tanh %245 : vector<8x64xf32>
    %247 = arith.mulf %242, %246 : vector<8x64xf32>
    %248 = vector.extract_strided_slice %247 {offsets = [0, 0], sizes = [8, 32], strides = [1, 1]} : vector<8x64xf32> to vector<8x32xf32>
    %249 = arith.index_cast %c5_i32 : i32 to index
    %c0_74 = arith.constant 0 : index
    %c0_75 = arith.constant 0 : index
    %250 = vector.load %arg11[%249, %c0_74, %c0_75] : memref<8x8x32xf32, #tpu.memory_space<vmem>>, vector<1x8x32xf32>
    %251 = vector.shape_cast %250 : vector<1x8x32xf32> to vector<8x32xf32>
    %252 = vector.shape_cast %248 : vector<8x32xf32> to vector<1x8x32xf32>
    tpu.vector_store %arg11[%249, %c0_74, %c0_75], %252 {strides = array<i32>} : memref<8x8x32xf32, #tpu.memory_space<vmem>>, vector<1x8x32xf32>,
    %253 = vector.extract_strided_slice %247 {offsets = [0, 32], sizes = [8, 32], strides = [1, 1]} : vector<8x64xf32> to vector<8x32xf32>
    %254 = arith.index_cast %217 : i32 to index
    %c0_76 = arith.constant 0 : index
    %c0_77 = arith.constant 0 : index
    %255 = vector.load %arg12[%254, %c0_76, %c0_77] : memref<8x8x32xf32, #tpu.memory_space<vmem>>, vector<1x8x32xf32>
    %256 = vector.shape_cast %255 : vector<1x8x32xf32> to vector<8x32xf32>
    %257 = vector.shape_cast %253 : vector<8x32xf32> to vector<1x8x32xf32>
    tpu.vector_store %arg12[%254, %c0_76, %c0_77], %257 {strides = array<i32>} : memref<8x8x32xf32, #tpu.memory_space<vmem>>, vector<1x8x32xf32>,
    %c6_i32 = arith.constant 6 : i32
    %c7_i32_78 = arith.constant 7 : i32
    %258 = arith.subi %c7_i32_78, %c6_i32 : i32
    %cst_79 = arith.constant dense<0.000000e+00> : vector<8x256xf32>
    %259 = tpu.matmul %247, %9, %cst_79 {dimension_numbers = #tpu.dot_dimension_numbers<[1], [0], [0], [1], [0, 0, 1, 1], [], []>} : vector<8x64xf32>, vector<64x256xf32>, vector<8x256xf32> -> vector<8x256xf32>
    %260 = arith.index_cast %c6_i32 : i32 to index
    %c0_80 = arith.constant 0 : index
    %c0_81 = arith.constant 0 : index
    %261 = vector.load %arg10[%260, %c0_80, %c0_81] : memref<8x8x256xf32, #tpu.memory_space<vmem>>, vector<1x8x256xf32>
    %262 = vector.shape_cast %261 : vector<1x8x256xf32> to vector<8x256xf32>
    %263 = arith.addf %262, %259 : vector<8x256xf32>
    %264 = vector.extract_strided_slice %263 {offsets = [0, 0], sizes = [8, 64], strides = [1, 1]} : vector<8x256xf32> to vector<8x64xf32>
    %265 = arith.negf %264 : vector<8x64xf32>
    %266 = math.exp %265 : vector<8x64xf32>
    %cst_82 = arith.constant 1.000000e+00 : f32
    %267 = vector.broadcast %cst_82 : f32 to vector<8x64xf32>
    %268 = arith.addf %267, %266 : vector<8x64xf32>
    %269 = arith.divf %267, %268 : vector<8x64xf32>
    %270 = vector.extract_strided_slice %263 {offsets = [0, 64], sizes = [8, 64], strides = [1, 1]} : vector<8x256xf32> to vector<8x64xf32>
    %271 = arith.negf %270 : vector<8x64xf32>
    %272 = math.exp %271 : vector<8x64xf32>
    %cst_83 = arith.constant 1.000000e+00 : f32
    %273 = vector.broadcast %cst_83 : f32 to vector<8x64xf32>
    %274 = arith.addf %273, %272 : vector<8x64xf32>
    %275 = arith.divf %273, %274 : vector<8x64xf32>
    %276 = vector.extract_strided_slice %263 {offsets = [0, 128], sizes = [8, 64], strides = [1, 1]} : vector<8x256xf32> to vector<8x64xf32>
    %277 = math.tanh %276 : vector<8x64xf32>
    %278 = vector.extract_strided_slice %263 {offsets = [0, 192], sizes = [8, 64], strides = [1, 1]} : vector<8x256xf32> to vector<8x64xf32>
    %279 = arith.negf %278 : vector<8x64xf32>
    %280 = math.exp %279 : vector<8x64xf32>
    %cst_84 = arith.constant 1.000000e+00 : f32
    %281 = vector.broadcast %cst_84 : f32 to vector<8x64xf32>
    %282 = arith.addf %281, %280 : vector<8x64xf32>
    %283 = arith.divf %281, %282 : vector<8x64xf32>
    %284 = arith.mulf %275, %245 : vector<8x64xf32>
    %285 = arith.mulf %269, %277 : vector<8x64xf32>
    %286 = arith.addf %284, %285 : vector<8x64xf32>
    %287 = math.tanh %286 : vector<8x64xf32>
    %288 = arith.mulf %283, %287 : vector<8x64xf32>
    %289 = vector.extract_strided_slice %288 {offsets = [0, 0], sizes = [8, 32], strides = [1, 1]} : vector<8x64xf32> to vector<8x32xf32>
    %290 = arith.index_cast %c6_i32 : i32 to index
    %c0_85 = arith.constant 0 : index
    %c0_86 = arith.constant 0 : index
    %291 = vector.load %arg11[%290, %c0_85, %c0_86] : memref<8x8x32xf32, #tpu.memory_space<vmem>>, vector<1x8x32xf32>
    %292 = vector.shape_cast %291 : vector<1x8x32xf32> to vector<8x32xf32>
    %293 = vector.shape_cast %289 : vector<8x32xf32> to vector<1x8x32xf32>
    tpu.vector_store %arg11[%290, %c0_85, %c0_86], %293 {strides = array<i32>} : memref<8x8x32xf32, #tpu.memory_space<vmem>>, vector<1x8x32xf32>,
    %294 = vector.extract_strided_slice %288 {offsets = [0, 32], sizes = [8, 32], strides = [1, 1]} : vector<8x64xf32> to vector<8x32xf32>
    %295 = arith.index_cast %258 : i32 to index
    %c0_87 = arith.constant 0 : index
    %c0_88 = arith.constant 0 : index
    %296 = vector.load %arg12[%295, %c0_87, %c0_88] : memref<8x8x32xf32, #tpu.memory_space<vmem>>, vector<1x8x32xf32>
    %297 = vector.shape_cast %296 : vector<1x8x32xf32> to vector<8x32xf32>
    %298 = vector.shape_cast %294 : vector<8x32xf32> to vector<1x8x32xf32>
    tpu.vector_store %arg12[%295, %c0_87, %c0_88], %298 {strides = array<i32>} : memref<8x8x32xf32, #tpu.memory_space<vmem>>, vector<1x8x32xf32>,
    %c7_i32_89 = arith.constant 7 : i32
    %c7_i32_90 = arith.constant 7 : i32
    %299 = arith.subi %c7_i32_90, %c7_i32_89 : i32
    %cst_91 = arith.constant dense<0.000000e+00> : vector<8x256xf32>
    %300 = tpu.matmul %288, %9, %cst_91 {dimension_numbers = #tpu.dot_dimension_numbers<[1], [0], [0], [1], [0, 0, 1, 1], [], []>} : vector<8x64xf32>, vector<64x256xf32>, vector<8x256xf32> -> vector<8x256xf32>
    %301 = arith.index_cast %c7_i32_89 : i32 to index
    %c0_92 = arith.constant 0 : index
    %c0_93 = arith.constant 0 : index
    %302 = vector.load %arg10[%301, %c0_92, %c0_93] : memref<8x8x256xf32, #tpu.memory_space<vmem>>, vector<1x8x256xf32>
    %303 = vector.shape_cast %302 : vector<1x8x256xf32> to vector<8x256xf32>
    %304 = arith.addf %303, %300 : vector<8x256xf32>
    %305 = vector.extract_strided_slice %304 {offsets = [0, 0], sizes = [8, 64], strides = [1, 1]} : vector<8x256xf32> to vector<8x64xf32>
    %306 = arith.negf %305 : vector<8x64xf32>
    %307 = math.exp %306 : vector<8x64xf32>
    %cst_94 = arith.constant 1.000000e+00 : f32
    %308 = vector.broadcast %cst_94 : f32 to vector<8x64xf32>
    %309 = arith.addf %308, %307 : vector<8x64xf32>
    %310 = arith.divf %308, %309 : vector<8x64xf32>
    %311 = vector.extract_strided_slice %304 {offsets = [0, 64], sizes = [8, 64], strides = [1, 1]} : vector<8x256xf32> to vector<8x64xf32>
    %312 = arith.negf %311 : vector<8x64xf32>
    %313 = math.exp %312 : vector<8x64xf32>
    %cst_95 = arith.constant 1.000000e+00 : f32
    %314 = vector.broadcast %cst_95 : f32 to vector<8x64xf32>
    %315 = arith.addf %314, %313 : vector<8x64xf32>
    %316 = arith.divf %314, %315 : vector<8x64xf32>
    %317 = vector.extract_strided_slice %304 {offsets = [0, 128], sizes = [8, 64], strides = [1, 1]} : vector<8x256xf32> to vector<8x64xf32>
    %318 = math.tanh %317 : vector<8x64xf32>
    %319 = vector.extract_strided_slice %304 {offsets = [0, 192], sizes = [8, 64], strides = [1, 1]} : vector<8x256xf32> to vector<8x64xf32>
    %320 = arith.negf %319 : vector<8x64xf32>
    %321 = math.exp %320 : vector<8x64xf32>
    %cst_96 = arith.constant 1.000000e+00 : f32
    %322 = vector.broadcast %cst_96 : f32 to vector<8x64xf32>
    %323 = arith.addf %322, %321 : vector<8x64xf32>
    %324 = arith.divf %322, %323 : vector<8x64xf32>
    %325 = arith.mulf %316, %286 : vector<8x64xf32>
    %326 = arith.mulf %310, %318 : vector<8x64xf32>
    %327 = arith.addf %325, %326 : vector<8x64xf32>
    %328 = math.tanh %327 : vector<8x64xf32>
    %329 = arith.mulf %324, %328 : vector<8x64xf32>
    %330 = vector.extract_strided_slice %329 {offsets = [0, 0], sizes = [8, 32], strides = [1, 1]} : vector<8x64xf32> to vector<8x32xf32>
    %331 = arith.index_cast %c7_i32_89 : i32 to index
    %c0_97 = arith.constant 0 : index
    %c0_98 = arith.constant 0 : index
    %332 = vector.load %arg11[%331, %c0_97, %c0_98] : memref<8x8x32xf32, #tpu.memory_space<vmem>>, vector<1x8x32xf32>
    %333 = vector.shape_cast %332 : vector<1x8x32xf32> to vector<8x32xf32>
    %334 = vector.shape_cast %330 : vector<8x32xf32> to vector<1x8x32xf32>
    tpu.vector_store %arg11[%331, %c0_97, %c0_98], %334 {strides = array<i32>} : memref<8x8x32xf32, #tpu.memory_space<vmem>>, vector<1x8x32xf32>,
    %335 = vector.extract_strided_slice %329 {offsets = [0, 32], sizes = [8, 32], strides = [1, 1]} : vector<8x64xf32> to vector<8x32xf32>
    %336 = arith.index_cast %299 : i32 to index
    %c0_99 = arith.constant 0 : index
    %c0_100 = arith.constant 0 : index
    %337 = vector.load %arg12[%336, %c0_99, %c0_100] : memref<8x8x32xf32, #tpu.memory_space<vmem>>, vector<1x8x32xf32>
    %338 = vector.shape_cast %337 : vector<1x8x32xf32> to vector<8x32xf32>
    %339 = vector.shape_cast %335 : vector<8x32xf32> to vector<1x8x32xf32>
    tpu.vector_store %arg12[%336, %c0_99, %c0_100], %339 {strides = array<i32>} : memref<8x8x32xf32, #tpu.memory_space<vmem>>, vector<1x8x32xf32>,
    %c8_i32 = arith.constant 8 : i32
    %c0_101 = arith.constant 0 : index
    %c0_102 = arith.constant 0 : index
    %c0_103 = arith.constant 0 : index
    %340 = vector.load %arg11[%c0_101, %c0_102, %c0_103] : memref<8x8x32xf32, #tpu.memory_space<vmem>>, vector<8x8x32xf32>
    %341 = vector.shape_cast %340 : vector<8x8x32xf32> to vector<64x32xf32>
    %c0_104 = arith.constant 0 : index
    %c0_105 = arith.constant 0 : index
    %c0_106 = arith.constant 0 : index
    %342 = vector.load %arg12[%c0_104, %c0_105, %c0_106] : memref<8x8x32xf32, #tpu.memory_space<vmem>>, vector<8x8x32xf32>
    %343 = vector.shape_cast %342 : vector<8x8x32xf32> to vector<64x32xf32>
    %344 = tpu.concatenate %341, %343 in 1 : vector<64x32xf32>, vector<64x32xf32> -> vector<64x64xf32>
    %cst_107 = arith.constant dense<0.000000e+00> : vector<64xf32>
    %345 = vector.multi_reduction <add>, %344, %cst_107 [1] : vector<64x64xf32> to vector<64xf32>
    %346 = vector.shape_cast %345 : vector<64xf32> to vector<64x1xf32>
    %cst_108 = arith.constant 6.400000e+01 : f32
    %347 = vector.broadcast %cst_108 : f32 to vector<64x1xf32>
    %348 = arith.divf %346, %347 : vector<64x1xf32>
    %349 = vector.broadcast %348 : vector<64x1xf32> to vector<64x64xf32>
    %350 = arith.subf %344, %349 : vector<64x64xf32>
    %351 = arith.mulf %350, %350 : vector<64x64xf32>
    %cst_109 = arith.constant dense<0.000000e+00> : vector<64xf32>
    %352 = vector.multi_reduction <add>, %351, %cst_109 [1] : vector<64x64xf32> to vector<64xf32>
    %353 = vector.shape_cast %352 : vector<64xf32> to vector<64x1xf32>
    %cst_110 = arith.constant 6.400000e+01 : f32
    %354 = vector.broadcast %cst_110 : f32 to vector<64x1xf32>
    %355 = arith.divf %353, %354 : vector<64x1xf32>
    %cst_111 = arith.constant 9.99999974E-6 : f32
    %356 = vector.broadcast %cst_111 : f32 to vector<64x1xf32>
    %357 = arith.addf %355, %356 : vector<64x1xf32>
    %358 = math.rsqrt %357 : vector<64x1xf32>
    %359 = vector.broadcast %358 : vector<64x1xf32> to vector<64x64xf32>
    %360 = arith.mulf %350, %359 : vector<64x64xf32>
    %c0_112 = arith.constant 0 : index
    %c0_113 = arith.constant 0 : index
    %361 = vector.load %arg5[%c0_112, %c0_113] : memref<1x64xf32, #tpu.memory_space<vmem>>, vector<1x64xf32>
    %362 = vector.broadcast %361 : vector<1x64xf32> to vector<64x64xf32>
    %363 = arith.mulf %360, %362 : vector<64x64xf32>
    %c0_114 = arith.constant 0 : index
    %c0_115 = arith.constant 0 : index
    %364 = vector.load %arg6[%c0_114, %c0_115] : memref<1x64xf32, #tpu.memory_space<vmem>>, vector<1x64xf32>
    %365 = vector.broadcast %364 : vector<1x64xf32> to vector<64x64xf32>
    %366 = arith.addf %363, %365 : vector<64x64xf32>
    %c0_116 = arith.constant 0 : index
    %c0_117 = arith.constant 0 : index
    %367 = vector.load %arg7[%c0_116, %c0_117] : memref<64x32xf32, #tpu.memory_space<vmem>>, vector<64x32xf32>
    %cst_118 = arith.constant dense<0.000000e+00> : vector<64x32xf32>
    %368 = tpu.matmul %366, %367, %cst_118 {dimension_numbers = #tpu.dot_dimension_numbers<[1], [0], [0], [1], [0, 0, 1, 1], [], []>} : vector<64x64xf32>, vector<64x32xf32>, vector<64x32xf32> -> vector<64x32xf32>
    %c0_119 = arith.constant 0 : index
    %c0_120 = arith.constant 0 : index
    %369 = vector.load %arg8[%c0_119, %c0_120] : memref<1x32xf32, #tpu.memory_space<vmem>>, vector<1x32xf32>
    %370 = vector.broadcast %369 : vector<1x32xf32> to vector<64x32xf32>
    %371 = arith.addf %368, %370 : vector<64x32xf32>
    %cst_121 = arith.constant 5.000000e-01 : f32
    %372 = vector.broadcast %cst_121 : f32 to vector<64x32xf32>
    %373 = arith.mulf %372, %371 : vector<64x32xf32>
    %cst_122 = arith.constant 0.707106769 : f32
    %374 = vector.broadcast %cst_122 : f32 to vector<64x32xf32>
    %375 = arith.mulf %371, %374 : vector<64x32xf32>
    %376 = math.absf %375 : vector<64x32xf32>
    %cst_123 = arith.constant 0.327591091 : f32
    %377 = vector.broadcast %cst_123 : f32 to vector<64x32xf32>
    %378 = arith.mulf %377, %376 : vector<64x32xf32>
    %cst_124 = arith.constant 1.000000e+00 : f32
    %379 = vector.broadcast %cst_124 : f32 to vector<64x32xf32>
    %380 = arith.addf %379, %378 : vector<64x32xf32>
    %cst_125 = arith.constant 1.000000e+00 : f32
    %381 = vector.broadcast %cst_125 : f32 to vector<64x32xf32>
    %382 = arith.divf %381, %380 : vector<64x32xf32>
    %cst_126 = arith.constant 1.06140542 : f32
    %383 = vector.broadcast %cst_126 : f32 to vector<64x32xf32>
    %384 = arith.mulf %383, %382 : vector<64x32xf32>
    %cst_127 = arith.constant -1.45315206 : f32
    %385 = vector.broadcast %cst_127 : f32 to vector<64x32xf32>
    %386 = arith.addf %384, %385 : vector<64x32xf32>
    %387 = arith.mulf %386, %382 : vector<64x32xf32>
    %cst_128 = arith.constant 1.42141378 : f32
    %388 = vector.broadcast %cst_128 : f32 to vector<64x32xf32>
    %389 = arith.addf %387, %388 : vector<64x32xf32>
    %390 = arith.mulf %389, %382 : vector<64x32xf32>
    %cst_129 = arith.constant -0.284496725 : f32
    %391 = vector.broadcast %cst_129 : f32 to vector<64x32xf32>
    %392 = arith.addf %390, %391 : vector<64x32xf32>
    %393 = arith.mulf %392, %382 : vector<64x32xf32>
    %cst_130 = arith.constant 0.254829586 : f32
    %394 = vector.broadcast %cst_130 : f32 to vector<64x32xf32>
    %395 = arith.addf %393, %394 : vector<64x32xf32>
    %396 = arith.mulf %395, %382 : vector<64x32xf32>
    %cst_131 = arith.constant 0.000000e+00 : f32
    %397 = vector.broadcast %cst_131 : f32 to vector<64x32xf32>
    %398 = arith.subf %397, %376 : vector<64x32xf32>
    %399 = arith.mulf %398, %376 : vector<64x32xf32>
    %400 = math.exp %399 : vector<64x32xf32>
    %401 = arith.mulf %396, %400 : vector<64x32xf32>
    %cst_132 = arith.constant 1.000000e+00 : f32
    %402 = vector.broadcast %cst_132 : f32 to vector<64x32xf32>
    %403 = arith.subf %402, %401 : vector<64x32xf32>
    %cst_133 = arith.constant 0.000000e+00 : f32
    %404 = vector.broadcast %cst_133 : f32 to vector<64x32xf32>
    %405 = arith.cmpf oge, %375, %404 : vector<64x32xf32>
    %cst_134 = arith.constant 0.000000e+00 : f32
    %406 = vector.broadcast %cst_134 : f32 to vector<64x32xf32>
    %407 = arith.subf %406, %403 : vector<64x32xf32>
    %408 = arith.select %405, %403, %407 : vector<64x32xi1>, vector<64x32xf32>
    %cst_135 = arith.constant 1.000000e+00 : f32
    %409 = vector.broadcast %cst_135 : f32 to vector<64x32xf32>
    %410 = arith.addf %409, %408 : vector<64x32xf32>
    %411 = arith.mulf %373, %410 : vector<64x32xf32>
    %c0_136 = arith.constant 0 : index
    %c0_137 = arith.constant 0 : index
    %c0_138 = arith.constant 0 : index
    %412 = vector.load %arg1[%c0_136, %c0_137, %c0_138] : memref<8x8x64xf32, #tpu.memory_space<vmem>>, vector<8x8x64xf32>
    %413 = vector.extract_strided_slice %412 {offsets = [0, 0, 0], sizes = [8, 8, 32], strides = [1, 1, 1]} : vector<8x8x64xf32> to vector<8x8x32xf32>
    %414 = vector.shape_cast %413 : vector<8x8x32xf32> to vector<64x32xf32>
    %415 = arith.addf %411, %414 : vector<64x32xf32>
    %416 = vector.shape_cast %415 : vector<64x32xf32> to vector<8x8x32xf32>
    %c0_139 = arith.constant 0 : index
    %c0_140 = arith.constant 0 : index
    %c0_141 = arith.constant 0 : index
    %417 = vector.load %arg9[%c0_139, %c0_140, %c0_141] : memref<8x8x32xf32, #tpu.memory_space<vmem>>, vector<8x8x32xf32>
    tpu.vector_store %arg9[%c0_139, %c0_140, %c0_141], %416 {strides = array<i32>} : memref<8x8x32xf32, #tpu.memory_space<vmem>>, vector<8x8x32xf32>,
    return
  }
  func.func @transform_0(%arg0: i32) -> (i32, i32, i32) {
    %c0_i32 = arith.constant 0 : i32
    %c0_i32_0 = arith.constant 0 : i32
    %c0_i32_1 = arith.constant 0 : i32
    return %c0_i32, %arg0, %c0_i32_0 : i32, i32, i32
  }
  func.func @transform_1(%arg0: i32) -> (i32, i32) {
    %c0_i32 = arith.constant 0 : i32
    %c0_i32_0 = arith.constant 0 : i32
    %c0_i32_1 = arith.constant 0 : i32
    return %c0_i32, %c0_i32_0 : i32, i32
  }
  func.func @transform_2(%arg0: i32) -> (i32, i32) {
    %c0_i32 = arith.constant 0 : i32
    %c0_i32_0 = arith.constant 0 : i32
    %c0_i32_1 = arith.constant 0 : i32
    return %c0_i32, %c0_i32_0 : i32, i32
  }
  func.func @transform_3(%arg0: i32) -> (i32, i32) {
    %c0_i32 = arith.constant 0 : i32
    %c0_i32_0 = arith.constant 0 : i32
    %c0_i32_1 = arith.constant 0 : i32
    return %c0_i32, %c0_i32_0 : i32, i32
  }
  func.func @transform_4(%arg0: i32) -> (i32, i32) {
    %c0_i32 = arith.constant 0 : i32
    %c0_i32_0 = arith.constant 0 : i32
    %c0_i32_1 = arith.constant 0 : i32
    return %c0_i32, %c0_i32_0 : i32, i32
  }
  func.func @transform_5(%arg0: i32) -> (i32, i32) {
    %c0_i32 = arith.constant 0 : i32
    %c0_i32_0 = arith.constant 0 : i32
    %c0_i32_1 = arith.constant 0 : i32
    return %c0_i32, %c0_i32_0 : i32, i32
  }
  func.func @transform_6(%arg0: i32) -> (i32, i32) {
    %c0_i32 = arith.constant 0 : i32
    %c0_i32_0 = arith.constant 0 : i32
    %c0_i32_1 = arith.constant 0 : i32
    return %c0_i32, %c0_i32_0 : i32, i32
  }
  func.func @transform_7(%arg0: i32) -> (i32, i32) {
    %c0_i32 = arith.constant 0 : i32
    %c0_i32_0 = arith.constant 0 : i32
    %c0_i32_1 = arith.constant 0 : i32
    return %c0_i32, %c0_i32_0 : i32, i32
  }
  func.func @transform_8(%arg0: i32) -> (i32, i32, i32) {
    %c0_i32 = arith.constant 0 : i32
    %c0_i32_0 = arith.constant 0 : i32
    %c0_i32_1 = arith.constant 0 : i32
    return %c0_i32, %arg0, %c0_i32_0 : i32, i32, i32
  }
}

</mosaic_0001>

<llo_original>
// kernel: lstm_bi_forward.1
$region0: #{lstm_bi_forward.1}
  #allocation0 [shape = 'u32[]', space=smem, size = 0x4, offset = 0x4, fixed_abs, tag = 'smem constant byte address 0x4 - core index']
  #allocation1 [shape = 'u32[144,128]{1,0:T(1,128)}', space=vmem, size = 0x12000, scoped, tag = 'internal scratch']
  #allocation2 [shape = 'f32[8,8,256]{2,1,0:T(8,128)}', space=vmem, size = 0x10000, scoped, tag = 'scratch operand']
  #allocation3 [shape = 'f32[8,8,32]{2,1,0:T(8,128)}', space=vmem, size = 0x8000, scoped, tag = 'scratch operand']
  #allocation4 [shape = 'f32[8,8,32]{2,1,0:T(8,128)}', space=vmem, size = 0x8000, scoped, tag = 'scratch operand']
  %s0 = inlined_call_operand.vmem [shape: f32[8,8,64], index: 0, kind: input, shape index: {}]
  %s1 = inlined_call_operand.vmem [shape: f32[64,256], index: 1, kind: input, shape index: {}]
  %s2 = inlined_call_operand.vmem [shape: f32[1,256], index: 2, kind: input, shape index: {}]
  %s3 = inlined_call_operand.vmem [shape: f32[64,256], index: 3, kind: input, shape index: {}]
  %s4 = inlined_call_operand.vmem [shape: f32[1,64], index: 4, kind: input, shape index: {}]
  %s5 = inlined_call_operand.vmem [shape: f32[1,64], index: 5, kind: input, shape index: {}]
  %s6 = inlined_call_operand.vmem [shape: f32[64,32], index: 6, kind: input, shape index: {}]
  %s7 = inlined_call_operand.vmem [shape: f32[1,32], index: 7, kind: input, shape index: {}]
  %s8 = inlined_call_operand.vmem [shape: f32[8,8,32], index: 8, kind: output, shape index: {}]
  %s9 = sld [smem:[#allocation0]]
  $region42: #{lstm_bi_forward.1} parent=0
    _
  %s11 = ssub.s32 1, %s9
  %s12 = scalar_select 0, %s11, %s9
  // Predicated region
  $region2: #{lstm_bi_forward.1} parent=0 // pred_check
    _
  $region3: #{lstm_bi_forward.1} parent=0 // pred_check_branch
    %14 = sbr.rel (0) target = $region5
  $region4: #{lstm_bi_forward.1} parent=0 // pred_region
    _
  $region5: #{lstm_bi_forward.1} parent=0 // pred_fallthru
    _
  // Predicated region
  $region6: #{lstm_bi_forward.1} parent=0 // pred_check
    _
  $region7: #{lstm_bi_forward.1} parent=0 // pred_check_branch
    %16 = sbr.rel (0) target = $region9
  $region8: #{lstm_bi_forward.1} parent=0 // pred_region
    _
  $region9: #{lstm_bi_forward.1} parent=0 // pred_fallthru
    _
  // Predicated region
  $region10: #{lstm_bi_forward.1} parent=0 // pred_check
    _
  $region11: #{lstm_bi_forward.1} parent=0 // pred_check_branch
    %18 = sbr.rel (0) target = $region13
  $region12: #{lstm_bi_forward.1} parent=0 // pred_region
    _
  $region13: #{lstm_bi_forward.1} parent=0 // pred_fallthru
    _
  // Predicated region
  $region14: #{lstm_bi_forward.1} parent=0 // pred_check
    _
  $region15: #{lstm_bi_forward.1} parent=0 // pred_check_branch
    %20 = sbr.rel (0) target = $region17
  $region16: #{lstm_bi_forward.1} parent=0 // pred_region
    _
  $region17: #{lstm_bi_forward.1} parent=0 // pred_fallthru
    _
  // Predicated region
  $region18: #{lstm_bi_forward.1} parent=0 // pred_check
    _
  $region19: #{lstm_bi_forward.1} parent=0 // pred_check_branch
    %22 = sbr.rel (0) target = $region21
  $region20: #{lstm_bi_forward.1} parent=0 // pred_region
    _
  $region21: #{lstm_bi_forward.1} parent=0 // pred_fallthru
    _
  // Predicated region
  $region22: #{lstm_bi_forward.1} parent=0 // pred_check
    _
  $region23: #{lstm_bi_forward.1} parent=0 // pred_check_branch
    %24 = sbr.rel (0) target = $region25
  $region24: #{lstm_bi_forward.1} parent=0 // pred_region
    _
  $region25: #{lstm_bi_forward.1} parent=0 // pred_fallthru
    _
  // Predicated region
  $region26: #{lstm_bi_forward.1} parent=0 // pred_check
    _
  $region27: #{lstm_bi_forward.1} parent=0 // pred_check_branch
    %26 = sbr.rel (0) target = $region29
  $region28: #{lstm_bi_forward.1} parent=0 // pred_region
    _
  $region29: #{lstm_bi_forward.1} parent=0 // pred_fallthru
    _
  // Predicated region
  $region30: #{lstm_bi_forward.1} parent=0 // pred_check
    _
  $region31: #{lstm_bi_forward.1} parent=0 // pred_check_branch
    %28 = sbr.rel (0) target = $region33
  $region32: #{lstm_bi_forward.1} parent=0 // pred_region
    _
  $region33: #{lstm_bi_forward.1} parent=0 // pred_fallthru
    _
  %v29 = vld [vmem:[%s0] sm:$0xff]
  %v30 = vld [vmem:[%s0 + $0x8] sm:$0xff]
  %v31 = vld [vmem:[%s0 + $0x10] sm:$0xff]
  %v32 = vld [vmem:[%s0 + $0x18] sm:$0xff]
  %v33 = vld [vmem:[%s0 + $0x20] sm:$0xff]
  %v34 = vld [vmem:[%s0 + $0x28] sm:$0xff]
  %v35 = vld [vmem:[%s0 + $0x30] sm:$0xff]
  %v36 = vld [vmem:[%s0 + $0x38] sm:$0xff]
  %v37 = vld [vmem:[%s1] sm:$0xff]
  %v38 = vld [vmem:[%s1 + $0x8] sm:$0xff]
  %v39 = vld [vmem:[%s1 + $0x10] sm:$0xff]
  %v40 = vld [vmem:[%s1 + $0x18] sm:$0xff]
  %v41 = vld [vmem:[%s1 + $0x20] sm:$0xff]
  %v42 = vld [vmem:[%s1 + $0x28] sm:$0xff]
  %v43 = vld [vmem:[%s1 + $0x30] sm:$0xff]
  %v44 = vld [vmem:[%s1 + $0x38] sm:$0xff]
  %v45 = vld [vmem:[%s1 + $0x40] sm:$0xff]
  %v46 = vld [vmem:[%s1 + $0x48] sm:$0xff]
  %v47 = vld [vmem:[%s1 + $0x50] sm:$0xff]
  %v48 = vld [vmem:[%s1 + $0x58] sm:$0xff]
  %v49 = vld [vmem:[%s1 + $0x60] sm:$0xff]
  %v50 = vld [vmem:[%s1 + $0x68] sm:$0xff]
  %v51 = vld [vmem:[%s1 + $0x70] sm:$0xff]
  %v52 = vld [vmem:[%s1 + $0x78] sm:$0xff]
  %v53 = vld [vmem:[%s2] sm:$0x3]
  %v55 = vlaneseq
  %v56 = vshrl.u32 %v55, 7
  %v57 = vsub.s32 0, %v56
  %v58 = vrot.slane %v53, %v57
  %v59 = vlaneseq
  %v60 = vshrl.u32 %v59, 7
  %v61 = vsub.s32 1, %v60
  %v62 = vrot.slane %v53, %v61
  %vm65 = vcmask 523264
  %v67 = vsel %vm65, %v29, 0
  %v70 = vsel %vm65, %v30, 0
  %v73 = vsel %vm65, %v31, 0
  %v76 = vsel %vm65, %v32, 0
  %v79 = vsel %vm65, %v33, 0
  %v82 = vsel %vm65, %v34, 0
  %v85 = vsel %vm65, %v35, 0
  %v88 = vsel %vm65, %v36, 0
  %90 = vmatprep.subr.mxu0 0.0
  %91 = vmatpush1.msra.mxu0 0.0
  %92 = vmatprep.subr.mxu0 0.0
  %93 = vmatpush1.msra.mxu0 0.0
  %94 = vmatprep.subr.mxu0 0.0
  %95 = vmatpush1.msra.mxu0 0.0
  %96 = vmatprep.subr.mxu0 0.0
  %97 = vmatpush1.msra.mxu0 0.0
  %98 = vmatprep.subr.mxu0 0.0
  %99 = vmatpush1.msra.mxu0 0.0
  %100 = vmatprep.subr.mxu0 0.0
  %101 = vmatpush1.msra.mxu0 0.0
  %102 = vmatprep.subr.mxu0 0.0
  %103 = vmatpush1.msra.mxu0 0.0
  %104 = vmatprep.subr.mxu0 0.0
  %105 = vmatpush1.msra.mxu0 0.0
  %106 = vmatprep.subr.mxu0 %v52
  %107 = vmatpush1.msra.mxu0 %v51
  %108 = vmatprep.subr.mxu0 %v50
  %109 = vmatpush1.msra.mxu0 %v49
  %110 = vmatprep.subr.mxu0 %v48
  %111 = vmatpush1.msra.mxu0 %v47
  %112 = vmatprep.subr.mxu0 %v46
  %113 = vmatpush1.msra.mxu0 %v45
  %114 = vmatprep.subr.mxu0 %v44
  %115 = vmatpush1.msra.mxu0 %v43
  %116 = vmatprep.subr.mxu0 %v42
  %117 = vmatpush1.msra.mxu0 %v41
  %118 = vmatprep.subr.mxu0 %v40
  %119 = vmatpush1.msra.mxu0 %v39
  %120 = vmatprep.subr.mxu0 %v38
  %121 = vmatpush1.msra.mxu0 %v37
  %122 = vmatprep.subr.mxu0 0.0
  %123 = vmatpush2.msra.mxu0 0.0
  %124 = vmatprep.subr.mxu0 0.0
  %125 = vmatpush2.msra.mxu0 0.0
  %126 = vmatprep.subr.mxu0 0.0
  %127 = vmatpush2.msra.mxu0 0.0
  %128 = vmatprep.subr.mxu0 0.0
  %129 = vmatpush2.msra.mxu0 0.0
  %130 = vmatprep.subr.mxu0 0.0
  %131 = vmatpush2.msra.mxu0 0.0
  %132 = vmatprep.subr.mxu0 0.0
  %133 = vmatpush2.msra.mxu0 0.0
  %134 = vmatprep.subr.mxu0 0.0
  %135 = vmatpush2.msra.mxu0 0.0
  %136 = vmatprep.subr.mxu0 0.0
  %137 = vmatpush2.msra.mxu0 0.0
  %138 = vmatprep.subr.mxu0 0.0
  %139 = vmatpush2.msra.mxu0 0.0
  %140 = vmatprep.subr.mxu0 0.0
  %141 = vmatpush2.msra.mxu0 0.0
  %142 = vmatprep.subr.mxu0 0.0
  %143 = vmatpush2.msra.mxu0 0.0
  %144 = vmatprep.subr.mxu0 0.0
  %145 = vmatpush2.msra.mxu0 0.0
  %146 = vmatprep.subr.mxu0 0.0
  %147 = vmatpush2.msra.mxu0 0.0
  %148 = vmatprep.subr.mxu0 0.0
  %149 = vmatpush2.msra.mxu0 0.0
  %150 = vmatprep.subr.mxu0 0.0
  %151 = vmatpush2.msra.mxu0 0.0
  %152 = vmatprep.subr.mxu0 0.0
  %153 = vmatpush2.msra.mxu0 0.0
  %154 = vmatprep.mubr.f32.mxu0 0.0
  %155 = vmatmul.mubr.f32.gmra.mxu0 %v67
  %v156 = vpop.f32.mrf.mxu0
  %v157 = vadd.f32 %v58, %v156
  %v158 = vpop.f32.mrf.mxu0
  %v159 = vadd.f32 %v62, %v158
  %160 = vmatprep.mubr.f32.mxu0 0.0
  %161 = vmatmul.mubr.f32.gmra.mxu0 %v70
  %v162 = vpop.f32.mrf.mxu0
  %v163 = vadd.f32 %v58, %v162
  %v164 = vpop.f32.mrf.mxu0
  %v165 = vadd.f32 %v62, %v164
  %166 = vmatprep.mubr.f32.mxu0 0.0
  %167 = vmatmul.mubr.f32.gmra.mxu0 %v73
  %v168 = vpop.f32.mrf.mxu0
  %v169 = vadd.f32 %v58, %v168
  %v170 = vpop.f32.mrf.mxu0
  %v171 = vadd.f32 %v62, %v170
  %172 = vmatprep.mubr.f32.mxu0 0.0
  %173 = vmatmul.mubr.f32.gmra.mxu0 %v76
  %v174 = vpop.f32.mrf.mxu0
  %v175 = vadd.f32 %v58, %v174
  %v176 = vpop.f32.mrf.mxu0
  %v177 = vadd.f32 %v62, %v176
  %178 = vmatprep.mubr.f32.mxu0 0.0
  %179 = vmatmul.mubr.f32.gmra.mxu0 %v79
  %v180 = vpop.f32.mrf.mxu0
  %v181 = vadd.f32 %v58, %v180
  %v182 = vpop.f32.mrf.mxu0
  %v183 = vadd.f32 %v62, %v182
  %184 = vmatprep.mubr.f32.mxu0 0.0
  %185 = vmatmul.mubr.f32.gmra.mxu0 %v82
  %v186 = vpop.f32.mrf.mxu0
  %v187 = vadd.f32 %v58, %v186
  %v188 = vpop.f32.mrf.mxu0
  %v189 = vadd.f32 %v62, %v188
  %190 = vmatprep.mubr.f32.mxu0 0.0
  %191 = vmatmul.mubr.f32.gmra.mxu0 %v85
  %v192 = vpop.f32.mrf.mxu0
  %v193 = vadd.f32 %v58, %v192
  %v194 = vpop.f32.mrf.mxu0
  %v195 = vadd.f32 %v62, %v194
  %196 = vmatprep.mubr.f32.mxu0 0.0
  %197 = vmatmul.mubr.f32.gmra.mxu0 %v88
  %v198 = vpop.f32.mrf.mxu0
  %v199 = vadd.f32 %v58, %v198
  %v200 = vpop.f32.mrf.mxu0
  %v201 = vadd.f32 %v62, %v200
  %202 = vdwg.mxu0
  %203 = vst [vmem:[#allocation2] sm:$0xff] %v157
  %204 = vst [vmem:[#allocation2 + $0x8] sm:$0xff] %v159
  %205 = vst [vmem:[#allocation2 + $0x10] sm:$0xff] %v163
  %206 = vst [vmem:[#allocation2 + $0x18] sm:$0xff] %v165
  %207 = vst [vmem:[#allocation2 + $0x20] sm:$0xff] %v169
  %208 = vst [vmem:[#allocation2 + $0x28] sm:$0xff] %v171
  %209 = vst [vmem:[#allocation2 + $0x30] sm:$0xff] %v175
  %210 = vst [vmem:[#allocation2 + $0x38] sm:$0xff] %v177
  %211 = vst [vmem:[#allocation2 + $0x40] sm:$0xff] %v181
  %212 = vst [vmem:[#allocation2 + $0x48] sm:$0xff] %v183
  %213 = vst [vmem:[#allocation2 + $0x50] sm:$0xff] %v187
  %214 = vst [vmem:[#allocation2 + $0x58] sm:$0xff] %v189
  %215 = vst [vmem:[#allocation2 + $0x60] sm:$0xff] %v193
  %216 = vst [vmem:[#allocation2 + $0x68] sm:$0xff] %v195
  %217 = vst [vmem:[#allocation2 + $0x70] sm:$0xff] %v199
  %218 = vst [vmem:[#allocation2 + $0x78] sm:$0xff] %v201
  %v219 = vld [vmem:[%s3] sm:$0xff]
  %v220 = vld [vmem:[%s3 + $0x8] sm:$0xff]
  %v221 = vld [vmem:[%s3 + $0x10] sm:$0xff]
  %v222 = vld [vmem:[%s3 + $0x18] sm:$0xff]
  %v223 = vld [vmem:[%s3 + $0x20] sm:$0xff]
  %v224 = vld [vmem:[%s3 + $0x28] sm:$0xff]
  %v225 = vld [vmem:[%s3 + $0x30] sm:$0xff]
  %v226 = vld [vmem:[%s3 + $0x38] sm:$0xff]
  %v227 = vld [vmem:[%s3 + $0x40] sm:$0xff]
  %v228 = vld [vmem:[%s3 + $0x48] sm:$0xff]
  %v229 = vld [vmem:[%s3 + $0x50] sm:$0xff]
  %v230 = vld [vmem:[%s3 + $0x58] sm:$0xff]
  %v231 = vld [vmem:[%s3 + $0x60] sm:$0xff]
  %v232 = vld [vmem:[%s3 + $0x68] sm:$0xff]
  %v233 = vld [vmem:[%s3 + $0x70] sm:$0xff]
  %v234 = vld [vmem:[%s3 + $0x78] sm:$0xff]
  %v236 = vsel %vm65, 0.0, 0
  %238 = vmatprep.subr.mxu0 0.0
  %239 = vmatpush1.msra.mxu0 0.0
  %240 = vmatprep.subr.mxu0 0.0
  %241 = vmatpush1.msra.mxu0 0.0
  %242 = vmatprep.subr.mxu0 0.0
  %243 = vmatpush1.msra.mxu0 0.0
  %244 = vmatprep.subr.mxu0 0.0
  %245 = vmatpush1.msra.mxu0 0.0
  %246 = vmatprep.subr.mxu0 0.0
  %247 = vmatpush1.msra.mxu0 0.0
  %248 = vmatprep.subr.mxu0 0.0
  %249 = vmatpush1.msra.mxu0 0.0
  %250 = vmatprep.subr.mxu0 0.0
  %251 = vmatpush1.msra.mxu0 0.0
  %252 = vmatprep.subr.mxu0 0.0
  %253 = vmatpush1.msra.mxu0 0.0
  %254 = vmatprep.subr.mxu0 %v234
  %255 = vmatpush1.msra.mxu0 %v233
  %256 = vmatprep.subr.mxu0 %v232
  %257 = vmatpush1.msra.mxu0 %v231
  %258 = vmatprep.subr.mxu0 %v230
  %259 = vmatpush1.msra.mxu0 %v229
  %260 = vmatprep.subr.mxu0 %v228
  %261 = vmatpush1.msra.mxu0 %v227
  %262 = vmatprep.subr.mxu0 %v226
  %263 = vmatpush1.msra.mxu0 %v225
  %264 = vmatprep.subr.mxu0 %v224
  %265 = vmatpush1.msra.mxu0 %v223
  %266 = vmatprep.subr.mxu0 %v222
  %267 = vmatpush1.msra.mxu0 %v221
  %268 = vmatprep.subr.mxu0 %v220
  %269 = vmatpush1.msra.mxu0 %v219
  %270 = vmatprep.subr.mxu0 0.0
  %271 = vmatpush2.msra.mxu0 0.0
  %272 = vmatprep.subr.mxu0 0.0
  %273 = vmatpush2.msra.mxu0 0.0
  %274 = vmatprep.subr.mxu0 0.0
  %275 = vmatpush2.msra.mxu0 0.0
  %276 = vmatprep.subr.mxu0 0.0
  %277 = vmatpush2.msra.mxu0 0.0
  %278 = vmatprep.subr.mxu0 0.0
  %279 = vmatpush2.msra.mxu0 0.0
  %280 = vmatprep.subr.mxu0 0.0
  %281 = vmatpush2.msra.mxu0 0.0
  %282 = vmatprep.subr.mxu0 0.0
  %283 = vmatpush2.msra.mxu0 0.0
  %284 = vmatprep.subr.mxu0 0.0
  %285 = vmatpush2.msra.mxu0 0.0
  %286 = vmatprep.subr.mxu0 0.0
  %287 = vmatpush2.msra.mxu0 0.0
  %288 = vmatprep.subr.mxu0 0.0
  %289 = vmatpush2.msra.mxu0 0.0
  %290 = vmatprep.subr.mxu0 0.0
  %291 = vmatpush2.msra.mxu0 0.0
  %292 = vmatprep.subr.mxu0 0.0
  %293 = vmatpush2.msra.mxu0 0.0
  %294 = vmatprep.subr.mxu0 0.0
  %295 = vmatpush2.msra.mxu0 0.0
  %296 = vmatprep.subr.mxu0 0.0
  %297 = vmatpush2.msra.mxu0 0.0
  %298 = vmatprep.subr.mxu0 0.0
  %299 = vmatpush2.msra.mxu0 0.0
  %300 = vmatprep.subr.mxu0 0.0
  %301 = vmatpush2.msra.mxu0 0.0
  %302 = vmatprep.mubr.f32.mxu0 0.0
  %303 = vmatmul.mubr.f32.gmra.mxu0 %v236
  %v304 = vpop.f32.mrf.mxu0
  %v305 = vadd.f32 0.0, %v304
  %v306 = vpop.f32.mrf.mxu0
  %v307 = vadd.f32 0.0, %v306
  %308 = vdwg.mxu0
  %v309 = vld [vmem:[#allocation2] sm:$0xff]
  %v310 = vld [vmem:[#allocation2 + $0x8] sm:$0xff]
  %v311 = vadd.f32 %v309, %v305
  %v312 = vadd.f32 %v310, %v307
  %v313 = vxor.u32 %v311, 2147483648
  %v314 = vmul.f32 %v313, 1.442695
  %v315 = vpow.pop %v314
  %v316 = vadd.f32 %v315, 1.0
  %v317 = vrcp.pop %v316
  %v318 = vmul.f32 1.0, %v317
  %v319 = vtanh.pop %v312
  %v320 = vxor.u32 %v312, 2147483648
  %v321 = vmul.f32 %v320, 1.442695
  %v322 = vpow.pop %v321
  %v323 = vadd.f32 %v322, 1.0
  %v324 = vrcp.pop %v323
  %v325 = vmul.f32 1.0, %v324
  %v326 = vmul.f32 %v318, 0.0
  %v327 = vmul.f32 %v318, %v319
  %329 = vrot.lane.b32.xlu0 %v327, 64
  %v330 = vpop.permute.xlu0 %329
  %v332 = vadd.f32 %v326, %v330
  %v333 = vtanh.pop %v332
  %v334 = vmul.f32 %v325, %v333
  %336 = vrot.lane.b32.xlu0 %v334, 64
  %v337 = vpop.permute.xlu0 %336
  %vm339 = vcmask 261120
  %340 = vst.msk [vmem:[#allocation3] sm:$0xff] %vm339, %v337
  %341 = vrot.lane.b32.xlu0 %v334, 32
  %v342 = vpop.permute.xlu0 %341
  %s344 = scalar_lea.vmem [#allocation4], 56
  %345 = vst.msk [vmem:[%s344] sm:$0xff] %vm339, %v342
  %v346 = vsel %vm65, %v337, 0
  %348 = vmatprep.subr.mxu0 0.0
  %349 = vmatpush1.msra.mxu0 0.0
  %350 = vmatprep.subr.mxu0 0.0
  %351 = vmatpush1.msra.mxu0 0.0
  %352 = vmatprep.subr.mxu0 0.0
  %353 = vmatpush1.msra.mxu0 0.0
  %354 = vmatprep.subr.mxu0 0.0
  %355 = vmatpush1.msra.mxu0 0.0
  %356 = vmatprep.subr.mxu0 0.0
  %357 = vmatpush1.msra.mxu0 0.0
  %358 = vmatprep.subr.mxu0 0.0
  %359 = vmatpush1.msra.mxu0 0.0
  %360 = vmatprep.subr.mxu0 0.0
  %361 = vmatpush1.msra.mxu0 0.0
  %362 = vmatprep.subr.mxu0 0.0
  %363 = vmatpush1.msra.mxu0 0.0
  %364 = vmatprep.subr.mxu0 %v234
  %365 = vmatpush1.msra.mxu0 %v233
  %366 = vmatprep.subr.mxu0 %v232
  %367 = vmatpush1.msra.mxu0 %v231
  %368 = vmatprep.subr.mxu0 %v230
  %369 = vmatpush1.msra.mxu0 %v229
  %370 = vmatprep.subr.mxu0 %v228
  %371 = vmatpush1.msra.mxu0 %v227
  %372 = vmatprep.subr.mxu0 %v226
  %373 = vmatpush1.msra.mxu0 %v225
  %374 = vmatprep.subr.mxu0 %v224
  %375 = vmatpush1.msra.mxu0 %v223
  %376 = vmatprep.subr.mxu0 %v222
  %377 = vmatpush1.msra.mxu0 %v221
  %378 = vmatprep.subr.mxu0 %v220
  %379 = vmatpush1.msra.mxu0 %v219
  %380 = vmatprep.subr.mxu0 0.0
  %381 = vmatpush2.msra.mxu0 0.0
  %382 = vmatprep.subr.mxu0 0.0
  %383 = vmatpush2.msra.mxu0 0.0
  %384 = vmatprep.subr.mxu0 0.0
  %385 = vmatpush2.msra.mxu0 0.0
  %386 = vmatprep.subr.mxu0 0.0
  %387 = vmatpush2.msra.mxu0 0.0
  %388 = vmatprep.subr.mxu0 0.0
  %389 = vmatpush2.msra.mxu0 0.0
  %390 = vmatprep.subr.mxu0 0.0
  %391 = vmatpush2.msra.mxu0 0.0
  %392 = vmatprep.subr.mxu0 0.0
  %393 = vmatpush2.msra.mxu0 0.0
  %394 = vmatprep.subr.mxu0 0.0
  %395 = vmatpush2.msra.mxu0 0.0
  %396 = vmatprep.subr.mxu0 0.0
  %397 = vmatpush2.msra.mxu0 0.0
  %398 = vmatprep.subr.mxu0 0.0
  %399 = vmatpush2.msra.mxu0 0.0
  %400 = vmatprep.subr.mxu0 0.0
  %401 = vmatpush2.msra.mxu0 0.0
  %402 = vmatprep.subr.mxu0 0.0
  %403 = vmatpush2.msra.mxu0 0.0
  %404 = vmatprep.subr.mxu0 0.0
  %405 = vmatpush2.msra.mxu0 0.0
  %406 = vmatprep.subr.mxu0 0.0
  %407 = vmatpush2.msra.mxu0 0.0
  %408 = vmatprep.subr.mxu0 0.0
  %409 = vmatpush2.msra.mxu0 0.0
  %410 = vmatprep.subr.mxu0 0.0
  %411 = vmatpush2.msra.mxu0 0.0
  %412 = vmatprep.mubr.f32.mxu0 0.0
  %413 = vmatmul.mubr.f32.gmra.mxu0 %v346
  %v414 = vpop.f32.mrf.mxu0
  %v415 = vadd.f32 0.0, %v414
  %v416 = vpop.f32.mrf.mxu0
  %v417 = vadd.f32 0.0, %v416
  %418 = vdwg.mxu0
  %s419 = scalar_lea.vmem [#allocation2], 16
  %v420 = vld [vmem:[%s419] sm:$0xff]
  %v421 = vld [vmem:[%s419 + $0x8] sm:$0xff]
  %v422 = vadd.f32 %v420, %v415
  %v423 = vadd.f32 %v421, %v417
  %v424 = vxor.u32 %v422, 2147483648
  %v425 = vmul.f32 %v424, 1.442695
  %v426 = vpow.pop %v425
  %v427 = vadd.f32 %v426, 1.0
  %v428 = vrcp.pop %v427
  %v429 = vmul.f32 1.0, %v428
  %v430 = vtanh.pop %v423
  %v431 = vxor.u32 %v423, 2147483648
  %v432 = vmul.f32 %v431, 1.442695
  %v433 = vpow.pop %v432
  %v434 = vadd.f32 %v433, 1.0
  %v435 = vrcp.pop %v434
  %v436 = vmul.f32 1.0, %v435
  %v437 = vmul.f32 %v429, %v332
  %v438 = vmul.f32 %v429, %v430
  %440 = vrot.lane.b32.xlu0 %v438, 64
  %v441 = vpop.permute.xlu0 %440
  %v443 = vadd.f32 %v437, %v441
  %v444 = vtanh.pop %v443
  %v445 = vmul.f32 %v436, %v444
  %447 = vrot.lane.b32.xlu0 %v445, 64
  %v448 = vpop.permute.xlu0 %447
  %s450 = scalar_lea.vmem [#allocation3], 8
  %451 = vst.msk [vmem:[%s450] sm:$0xff] %vm339, %v448
  %452 = vrot.lane.b32.xlu0 %v445, 32
  %v453 = vpop.permute.xlu0 %452
  %s455 = scalar_lea.vmem [#allocation4], 48
  %456 = vst.msk [vmem:[%s455] sm:$0xff] %vm339, %v453
  %v457 = vsel %vm65, %v448, 0
  %459 = vmatprep.subr.mxu0 0.0
  %460 = vmatpush1.msra.mxu0 0.0
  %461 = vmatprep.subr.mxu0 0.0
  %462 = vmatpush1.msra.mxu0 0.0
  %463 = vmatprep.subr.mxu0 0.0
  %464 = vmatpush1.msra.mxu0 0.0
  %465 = vmatprep.subr.mxu0 0.0
  %466 = vmatpush1.msra.mxu0 0.0
  %467 = vmatprep.subr.mxu0 0.0
  %468 = vmatpush1.msra.mxu0 0.0
  %469 = vmatprep.subr.mxu0 0.0
  %470 = vmatpush1.msra.mxu0 0.0
  %471 = vmatprep.subr.mxu0 0.0
  %472 = vmatpush1.msra.mxu0 0.0
  %473 = vmatprep.subr.mxu0 0.0
  %474 = vmatpush1.msra.mxu0 0.0
  %475 = vmatprep.subr.mxu0 %v234
  %476 = vmatpush1.msra.mxu0 %v233
  %477 = vmatprep.subr.mxu0 %v232
  %478 = vmatpush1.msra.mxu0 %v231
  %479 = vmatprep.subr.mxu0 %v230
  %480 = vmatpush1.msra.mxu0 %v229
  %481 = vmatprep.subr.mxu0 %v228
  %482 = vmatpush1.msra.mxu0 %v227
  %483 = vmatprep.subr.mxu0 %v226
  %484 = vmatpush1.msra.mxu0 %v225
  %485 = vmatprep.subr.mxu0 %v224
  %486 = vmatpush1.msra.mxu0 %v223
  %487 = vmatprep.subr.mxu0 %v222
  %488 = vmatpush1.msra.mxu0 %v221
  %489 = vmatprep.subr.mxu0 %v220
  %490 = vmatpush1.msra.mxu0 %v219
  %491 = vmatprep.subr.mxu0 0.0
  %492 = vmatpush2.msra.mxu0 0.0
  %493 = vmatprep.subr.mxu0 0.0
  %494 = vmatpush2.msra.mxu0 0.0
  %495 = vmatprep.subr.mxu0 0.0
  %496 = vmatpush2.msra.mxu0 0.0
  %497 = vmatprep.subr.mxu0 0.0
  %498 = vmatpush2.msra.mxu0 0.0
  %499 = vmatprep.subr.mxu0 0.0
  %500 = vmatpush2.msra.mxu0 0.0
  %501 = vmatprep.subr.mxu0 0.0
  %502 = vmatpush2.msra.mxu0 0.0
  %503 = vmatprep.subr.mxu0 0.0
  %504 = vmatpush2.msra.mxu0 0.0
  %505 = vmatprep.subr.mxu0 0.0
  %506 = vmatpush2.msra.mxu0 0.0
  %507 = vmatprep.subr.mxu0 0.0
  %508 = vmatpush2.msra.mxu0 0.0
  %509 = vmatprep.subr.mxu0 0.0
  %510 = vmatpush2.msra.mxu0 0.0
  %511 = vmatprep.subr.mxu0 0.0
  %512 = vmatpush2.msra.mxu0 0.0
  %513 = vmatprep.subr.mxu0 0.0
  %514 = vmatpush2.msra.mxu0 0.0
  %515 = vmatprep.subr.mxu0 0.0
  %516 = vmatpush2.msra.mxu0 0.0
  %517 = vmatprep.subr.mxu0 0.0
  %518 = vmatpush2.msra.mxu0 0.0
  %519 = vmatprep.subr.mxu0 0.0
  %520 = vmatpush2.msra.mxu0 0.0
  %521 = vmatprep.subr.mxu0 0.0
  %522 = vmatpush2.msra.mxu0 0.0
  %523 = vmatprep.mubr.f32.mxu0 0.0
  %524 = vmatmul.mubr.f32.gmra.mxu0 %v457
  %v525 = vpop.f32.mrf.mxu0
  %v526 = vadd.f32 0.0, %v525
  %v527 = vpop.f32.mrf.mxu0
  %v528 = vadd.f32 0.0, %v527
  %529 = vdwg.mxu0
  %s530 = scalar_lea.vmem [#allocation2], 32
  %v531 = vld [vmem:[%s530] sm:$0xff]
  %v532 = vld [vmem:[%s530 + $0x8] sm:$0xff]
  %v533 = vadd.f32 %v531, %v526
  %v534 = vadd.f32 %v532, %v528
  %v535 = vxor.u32 %v533, 2147483648
  %v536 = vmul.f32 %v535, 1.442695
  %v537 = vpow.pop %v536
  %v538 = vadd.f32 %v537, 1.0
  %v539 = vrcp.pop %v538
  %v540 = vmul.f32 1.0, %v539
  %v541 = vtanh.pop %v534
  %v542 = vxor.u32 %v534, 2147483648
  %v543 = vmul.f32 %v542, 1.442695
  %v544 = vpow.pop %v543
  %v545 = vadd.f32 %v544, 1.0
  %v546 = vrcp.pop %v545
  %v547 = vmul.f32 1.0, %v546
  %v548 = vmul.f32 %v540, %v443
  %v549 = vmul.f32 %v540, %v541
  %551 = vrot.lane.b32.xlu0 %v549, 64
  %v552 = vpop.permute.xlu0 %551
  %v554 = vadd.f32 %v548, %v552
  %v555 = vtanh.pop %v554
  %v556 = vmul.f32 %v547, %v555
  %558 = vrot.lane.b32.xlu0 %v556, 64
  %v559 = vpop.permute.xlu0 %558
  %s561 = scalar_lea.vmem [#allocation3], 16
  %562 = vst.msk [vmem:[%s561] sm:$0xff] %vm339, %v559
  %563 = vrot.lane.b32.xlu0 %v556, 32
  %v564 = vpop.permute.xlu0 %563
  %s566 = scalar_lea.vmem [#allocation4], 40
  %567 = vst.msk [vmem:[%s566] sm:$0xff] %vm339, %v564
  %v568 = vsel %vm65, %v559, 0
  %570 = vmatprep.subr.mxu0 0.0
  %571 = vmatpush1.msra.mxu0 0.0
  %572 = vmatprep.subr.mxu0 0.0
  %573 = vmatpush1.msra.mxu0 0.0
  %574 = vmatprep.subr.mxu0 0.0
  %575 = vmatpush1.msra.mxu0 0.0
  %576 = vmatprep.subr.mxu0 0.0
  %577 = vmatpush1.msra.mxu0 0.0
  %578 = vmatprep.subr.mxu0 0.0
  %579 = vmatpush1.msra.mxu0 0.0
  %580 = vmatprep.subr.mxu0 0.0
  %581 = vmatpush1.msra.mxu0 0.0
  %582 = vmatprep.subr.mxu0 0.0
  %583 = vmatpush1.msra.mxu0 0.0
  %584 = vmatprep.subr.mxu0 0.0
  %585 = vmatpush1.msra.mxu0 0.0
  %586 = vmatprep.subr.mxu0 %v234
  %587 = vmatpush1.msra.mxu0 %v233
  %588 = vmatprep.subr.mxu0 %v232
  %589 = vmatpush1.msra.mxu0 %v231
  %590 = vmatprep.subr.mxu0 %v230
  %591 = vmatpush1.msra.mxu0 %v229
  %592 = vmatprep.subr.mxu0 %v228
  %593 = vmatpush1.msra.mxu0 %v227
  %594 = vmatprep.subr.mxu0 %v226
  %595 = vmatpush1.msra.mxu0 %v225
  %596 = vmatprep.subr.mxu0 %v224
  %597 = vmatpush1.msra.mxu0 %v223
  %598 = vmatprep.subr.mxu0 %v222
  %599 = vmatpush1.msra.mxu0 %v221
  %600 = vmatprep.subr.mxu0 %v220
  %601 = vmatpush1.msra.mxu0 %v219
  %602 = vmatprep.subr.mxu0 0.0
  %603 = vmatpush2.msra.mxu0 0.0
  %604 = vmatprep.subr.mxu0 0.0
  %605 = vmatpush2.msra.mxu0 0.0
  %606 = vmatprep.subr.mxu0 0.0
  %607 = vmatpush2.msra.mxu0 0.0
  %608 = vmatprep.subr.mxu0 0.0
  %609 = vmatpush2.msra.mxu0 0.0
  %610 = vmatprep.subr.mxu0 0.0
  %611 = vmatpush2.msra.mxu0 0.0
  %612 = vmatprep.subr.mxu0 0.0
  %613 = vmatpush2.msra.mxu0 0.0
  %614 = vmatprep.subr.mxu0 0.0
  %615 = vmatpush2.msra.mxu0 0.0
  %616 = vmatprep.subr.mxu0 0.0
  %617 = vmatpush2.msra.mxu0 0.0
  %618 = vmatprep.subr.mxu0 0.0
  %619 = vmatpush2.msra.mxu0 0.0
  %620 = vmatprep.subr.mxu0 0.0
  %621 = vmatpush2.msra.mxu0 0.0
  %622 = vmatprep.subr.mxu0 0.0
  %623 = vmatpush2.msra.mxu0 0.0
  %624 = vmatprep.subr.mxu0 0.0
  %625 = vmatpush2.msra.mxu0 0.0
  %626 = vmatprep.subr.mxu0 0.0
  %627 = vmatpush2.msra.mxu0 0.0
  %628 = vmatprep.subr.mxu0 0.0
  %629 = vmatpush2.msra.mxu0 0.0
  %630 = vmatprep.subr.mxu0 0.0
  %631 = vmatpush2.msra.mxu0 0.0
  %632 = vmatprep.subr.mxu0 0.0
  %633 = vmatpush2.msra.mxu0 0.0
  %634 = vmatprep.mubr.f32.mxu0 0.0
  %635 = vmatmul.mubr.f32.gmra.mxu0 %v568
  %v636 = vpop.f32.mrf.mxu0
  %v637 = vadd.f32 0.0, %v636
  %v638 = vpop.f32.mrf.mxu0
  %v639 = vadd.f32 0.0, %v638
  %640 = vdwg.mxu0
  %s641 = scalar_lea.vmem [#allocation2], 48
  %v642 = vld [vmem:[%s641] sm:$0xff]
  %v643 = vld [vmem:[%s641 + $0x8] sm:$0xff]
  %v644 = vadd.f32 %v642, %v637
  %v645 = vadd.f32 %v643, %v639
  %v646 = vxor.u32 %v644, 2147483648
  %v647 = vmul.f32 %v646, 1.442695
  %v648 = vpow.pop %v647
  %v649 = vadd.f32 %v648, 1.0
  %v650 = vrcp.pop %v649
  %v651 = vmul.f32 1.0, %v650
  %v652 = vtanh.pop %v645
  %v653 = vxor.u32 %v645, 2147483648
  %v654 = vmul.f32 %v653, 1.442695
  %v655 = vpow.pop %v654
  %v656 = vadd.f32 %v655, 1.0
  %v657 = vrcp.pop %v656
  %v658 = vmul.f32 1.0, %v657
  %v659 = vmul.f32 %v651, %v554
  %v660 = vmul.f32 %v651, %v652
  %662 = vrot.lane.b32.xlu0 %v660, 64
  %v663 = vpop.permute.xlu0 %662
  %v665 = vadd.f32 %v659, %v663
  %v666 = vtanh.pop %v665
  %v667 = vmul.f32 %v658, %v666
  %669 = vrot.lane.b32.xlu0 %v667, 64
  %v670 = vpop.permute.xlu0 %669
  %s672 = scalar_lea.vmem [#allocation3], 24
  %673 = vst.msk [vmem:[%s672] sm:$0xff] %vm339, %v670
  %674 = vrot.lane.b32.xlu0 %v667, 32
  %v675 = vpop.permute.xlu0 %674
  %s677 = scalar_lea.vmem [#allocation4], 32
  %678 = vst.msk [vmem:[%s677] sm:$0xff] %vm339, %v675
  %v679 = vsel %vm65, %v670, 0
  %681 = vmatprep.subr.mxu0 0.0
  %682 = vmatpush1.msra.mxu0 0.0
  %683 = vmatprep.subr.mxu0 0.0
  %684 = vmatpush1.msra.mxu0 0.0
  %685 = vmatprep.subr.mxu0 0.0
  %686 = vmatpush1.msra.mxu0 0.0
  %687 = vmatprep.subr.mxu0 0.0
  %688 = vmatpush1.msra.mxu0 0.0
  %689 = vmatprep.subr.mxu0 0.0
  %690 = vmatpush1.msra.mxu0 0.0
  %691 = vmatprep.subr.mxu0 0.0
  %692 = vmatpush1.msra.mxu0 0.0
  %693 = vmatprep.subr.mxu0 0.0
  %694 = vmatpush1.msra.mxu0 0.0
  %695 = vmatprep.subr.mxu0 0.0
  %696 = vmatpush1.msra.mxu0 0.0
  %697 = vmatprep.subr.mxu0 %v234
  %698 = vmatpush1.msra.mxu0 %v233
  %699 = vmatprep.subr.mxu0 %v232
  %700 = vmatpush1.msra.mxu0 %v231
  %701 = vmatprep.subr.mxu0 %v230
  %702 = vmatpush1.msra.mxu0 %v229
  %703 = vmatprep.subr.mxu0 %v228
  %704 = vmatpush1.msra.mxu0 %v227
  %705 = vmatprep.subr.mxu0 %v226
  %706 = vmatpush1.msra.mxu0 %v225
  %707 = vmatprep.subr.mxu0 %v224
  %708 = vmatpush1.msra.mxu0 %v223
  %709 = vmatprep.subr.mxu0 %v222
  %710 = vmatpush1.msra.mxu0 %v221
  %711 = vmatprep.subr.mxu0 %v220
  %712 = vmatpush1.msra.mxu0 %v219
  %713 = vmatprep.subr.mxu0 0.0
  %714 = vmatpush2.msra.mxu0 0.0
  %715 = vmatprep.subr.mxu0 0.0
  %716 = vmatpush2.msra.mxu0 0.0
  %717 = vmatprep.subr.mxu0 0.0
  %718 = vmatpush2.msra.mxu0 0.0
  %719 = vmatprep.subr.mxu0 0.0
  %720 = vmatpush2.msra.mxu0 0.0
  %721 = vmatprep.subr.mxu0 0.0
  %722 = vmatpush2.msra.mxu0 0.0
  %723 = vmatprep.subr.mxu0 0.0
  %724 = vmatpush2.msra.mxu0 0.0
  %725 = vmatprep.subr.mxu0 0.0
  %726 = vmatpush2.msra.mxu0 0.0
  %727 = vmatprep.subr.mxu0 0.0
  %728 = vmatpush2.msra.mxu0 0.0
  %729 = vmatprep.subr.mxu0 0.0
  %730 = vmatpush2.msra.mxu0 0.0
  %731 = vmatprep.subr.mxu0 0.0
  %732 = vmatpush2.msra.mxu0 0.0
  %733 = vmatprep.subr.mxu0 0.0
  %734 = vmatpush2.msra.mxu0 0.0
  %735 = vmatprep.subr.mxu0 0.0
  %736 = vmatpush2.msra.mxu0 0.0
  %737 = vmatprep.subr.mxu0 0.0
  %738 = vmatpush2.msra.mxu0 0.0
  %739 = vmatprep.subr.mxu0 0.0
  %740 = vmatpush2.msra.mxu0 0.0
  %741 = vmatprep.subr.mxu0 0.0
  %742 = vmatpush2.msra.mxu0 0.0
  %743 = vmatprep.subr.mxu0 0.0
  %744 = vmatpush2.msra.mxu0 0.0
  %745 = vmatprep.mubr.f32.mxu0 0.0
  %746 = vmatmul.mubr.f32.gmra.mxu0 %v679
  %v747 = vpop.f32.mrf.mxu0
  %v748 = vadd.f32 0.0, %v747
  %v749 = vpop.f32.mrf.mxu0
  %v750 = vadd.f32 0.0, %v749
  %751 = vdwg.mxu0
  %s752 = scalar_lea.vmem [#allocation2], 64
  %v753 = vld [vmem:[%s752] sm:$0xff]
  %v754 = vld [vmem:[%s752 + $0x8] sm:$0xff]
  %v755 = vadd.f32 %v753, %v748
  %v756 = vadd.f32 %v754, %v750
  %v757 = vxor.u32 %v755, 2147483648
  %v758 = vmul.f32 %v757, 1.442695
  %v759 = vpow.pop %v758
  %v760 = vadd.f32 %v759, 1.0
  %v761 = vrcp.pop %v760
  %v762 = vmul.f32 1.0, %v761
  %v763 = vtanh.pop %v756
  %v764 = vxor.u32 %v756, 2147483648
  %v765 = vmul.f32 %v764, 1.442695
  %v766 = vpow.pop %v765
  %v767 = vadd.f32 %v766, 1.0
  %v768 = vrcp.pop %v767
  %v769 = vmul.f32 1.0, %v768
  %v770 = vmul.f32 %v762, %v665
  %v771 = vmul.f32 %v762, %v763
  %773 = vrot.lane.b32.xlu0 %v771, 64
  %v774 = vpop.permute.xlu0 %773
  %v776 = vadd.f32 %v770, %v774
  %v777 = vtanh.pop %v776
  %v778 = vmul.f32 %v769, %v777
  %780 = vrot.lane.b32.xlu0 %v778, 64
  %v781 = vpop.permute.xlu0 %780
  %s783 = scalar_lea.vmem [#allocation3], 32
  %784 = vst.msk [vmem:[%s783] sm:$0xff] %vm339, %v781
  %785 = vrot.lane.b32.xlu0 %v778, 32
  %v786 = vpop.permute.xlu0 %785
  %s788 = scalar_lea.vmem [#allocation4], 24
  %789 = vst.msk [vmem:[%s788] sm:$0xff] %vm339, %v786
  %v790 = vsel %vm65, %v781, 0
  %792 = vmatprep.subr.mxu0 0.0
  %793 = vmatpush1.msra.mxu0 0.0
  %794 = vmatprep.subr.mxu0 0.0
  %795 = vmatpush1.msra.mxu0 0.0
  %796 = vmatprep.subr.mxu0 0.0
  %797 = vmatpush1.msra.mxu0 0.0
  %798 = vmatprep.subr.mxu0 0.0
  %799 = vmatpush1.msra.mxu0 0.0
  %800 = vmatprep.subr.mxu0 0.0
  %801 = vmatpush1.msra.mxu0 0.0
  %802 = vmatprep.subr.mxu0 0.0
  %803 = vmatpush1.msra.mxu0 0.0
  %804 = vmatprep.subr.mxu0 0.0
  %805 = vmatpush1.msra.mxu0 0.0
  %806 = vmatprep.subr.mxu0 0.0
  %807 = vmatpush1.msra.mxu0 0.0
  %808 = vmatprep.subr.mxu0 %v234
  %809 = vmatpush1.msra.mxu0 %v233
  %810 = vmatprep.subr.mxu0 %v232
  %811 = vmatpush1.msra.mxu0 %v231
  %812 = vmatprep.subr.mxu0 %v230
  %813 = vmatpush1.msra.mxu0 %v229
  %814 = vmatprep.subr.mxu0 %v228
  %815 = vmatpush1.msra.mxu0 %v227
  %816 = vmatprep.subr.mxu0 %v226
  %817 = vmatpush1.msra.mxu0 %v225
  %818 = vmatprep.subr.mxu0 %v224
  %819 = vmatpush1.msra.mxu0 %v223
  %820 = vmatprep.subr.mxu0 %v222
  %821 = vmatpush1.msra.mxu0 %v221
  %822 = vmatprep.subr.mxu0 %v220
  %823 = vmatpush1.msra.mxu0 %v219
  %824 = vmatprep.subr.mxu0 0.0
  %825 = vmatpush2.msra.mxu0 0.0
  %826 = vmatprep.subr.mxu0 0.0
  %827 = vmatpush2.msra.mxu0 0.0
  %828 = vmatprep.subr.mxu0 0.0
  %829 = vmatpush2.msra.mxu0 0.0
  %830 = vmatprep.subr.mxu0 0.0
  %831 = vmatpush2.msra.mxu0 0.0
  %832 = vmatprep.subr.mxu0 0.0
  %833 = vmatpush2.msra.mxu0 0.0
  %834 = vmatprep.subr.mxu0 0.0
  %835 = vmatpush2.msra.mxu0 0.0
  %836 = vmatprep.subr.mxu0 0.0
  %837 = vmatpush2.msra.mxu0 0.0
  %838 = vmatprep.subr.mxu0 0.0
  %839 = vmatpush2.msra.mxu0 0.0
  %840 = vmatprep.subr.mxu0 0.0
  %841 = vmatpush2.msra.mxu0 0.0
  %842 = vmatprep.subr.mxu0 0.0
  %843 = vmatpush2.msra.mxu0 0.0
  %844 = vmatprep.subr.mxu0 0.0
  %845 = vmatpush2.msra.mxu0 0.0
  %846 = vmatprep.subr.mxu0 0.0
  %847 = vmatpush2.msra.mxu0 0.0
  %848 = vmatprep.subr.mxu0 0.0
  %849 = vmatpush2.msra.mxu0 0.0
  %850 = vmatprep.subr.mxu0 0.0
  %851 = vmatpush2.msra.mxu0 0.0
  %852 = vmatprep.subr.mxu0 0.0
  %853 = vmatpush2.msra.mxu0 0.0
  %854 = vmatprep.subr.mxu0 0.0
  %855 = vmatpush2.msra.mxu0 0.0
  %856 = vmatprep.mubr.f32.mxu0 0.0
  %857 = vmatmul.mubr.f32.gmra.mxu0 %v790
  %v858 = vpop.f32.mrf.mxu0
  %v859 = vadd.f32 0.0, %v858
  %v860 = vpop.f32.mrf.mxu0
  %v861 = vadd.f32 0.0, %v860
  %862 = vdwg.mxu0
  %s863 = scalar_lea.vmem [#allocation2], 80
  %v864 = vld [vmem:[%s863] sm:$0xff]
  %v865 = vld [vmem:[%s863 + $0x8] sm:$0xff]
  %v866 = vadd.f32 %v864, %v859
  %v867 = vadd.f32 %v865, %v861
  %v868 = vxor.u32 %v866, 2147483648
  %v869 = vmul.f32 %v868, 1.442695
  %v870 = vpow.pop %v869
  %v871 = vadd.f32 %v870, 1.0
  %v872 = vrcp.pop %v871
  %v873 = vmul.f32 1.0, %v872
  %v874 = vtanh.pop %v867
  %v875 = vxor.u32 %v867, 2147483648
  %v876 = vmul.f32 %v875, 1.442695
  %v877 = vpow.pop %v876
  %v878 = vadd.f32 %v877, 1.0
  %v879 = vrcp.pop %v878
  %v880 = vmul.f32 1.0, %v879
  %v881 = vmul.f32 %v873, %v776
  %v882 = vmul.f32 %v873, %v874
  %884 = vrot.lane.b32.xlu0 %v882, 64
  %v885 = vpop.permute.xlu0 %884
  %v887 = vadd.f32 %v881, %v885
  %v888 = vtanh.pop %v887
  %v889 = vmul.f32 %v880, %v888
  %891 = vrot.lane.b32.xlu0 %v889, 64
  %v892 = vpop.permute.xlu0 %891
  %s894 = scalar_lea.vmem [#allocation3], 40
  %895 = vst.msk [vmem:[%s894] sm:$0xff] %vm339, %v892
  %896 = vrot.lane.b32.xlu0 %v889, 32
  %v897 = vpop.permute.xlu0 %896
  %s899 = scalar_lea.vmem [#allocation4], 16
  %900 = vst.msk [vmem:[%s899] sm:$0xff] %vm339, %v897
  %v901 = vsel %vm65, %v892, 0
  %903 = vmatprep.subr.mxu0 0.0
  %904 = vmatpush1.msra.mxu0 0.0
  %905 = vmatprep.subr.mxu0 0.0
  %906 = vmatpush1.msra.mxu0 0.0
  %907 = vmatprep.subr.mxu0 0.0
  %908 = vmatpush1.msra.mxu0 0.0
  %909 = vmatprep.subr.mxu0 0.0
  %910 = vmatpush1.msra.mxu0 0.0
  %911 = vmatprep.subr.mxu0 0.0
  %912 = vmatpush1.msra.mxu0 0.0
  %913 = vmatprep.subr.mxu0 0.0
  %914 = vmatpush1.msra.mxu0 0.0
  %915 = vmatprep.subr.mxu0 0.0
  %916 = vmatpush1.msra.mxu0 0.0
  %917 = vmatprep.subr.mxu0 0.0
  %918 = vmatpush1.msra.mxu0 0.0
  %919 = vmatprep.subr.mxu0 %v234
  %920 = vmatpush1.msra.mxu0 %v233
  %921 = vmatprep.subr.mxu0 %v232
  %922 = vmatpush1.msra.mxu0 %v231
  %923 = vmatprep.subr.mxu0 %v230
  %924 = vmatpush1.msra.mxu0 %v229
  %925 = vmatprep.subr.mxu0 %v228
  %926 = vmatpush1.msra.mxu0 %v227
  %927 = vmatprep.subr.mxu0 %v226
  %928 = vmatpush1.msra.mxu0 %v225
  %929 = vmatprep.subr.mxu0 %v224
  %930 = vmatpush1.msra.mxu0 %v223
  %931 = vmatprep.subr.mxu0 %v222
  %932 = vmatpush1.msra.mxu0 %v221
  %933 = vmatprep.subr.mxu0 %v220
  %934 = vmatpush1.msra.mxu0 %v219
  %935 = vmatprep.subr.mxu0 0.0
  %936 = vmatpush2.msra.mxu0 0.0
  %937 = vmatprep.subr.mxu0 0.0
  %938 = vmatpush2.msra.mxu0 0.0
  %939 = vmatprep.subr.mxu0 0.0
  %940 = vmatpush2.msra.mxu0 0.0
  %941 = vmatprep.subr.mxu0 0.0
  %942 = vmatpush2.msra.mxu0 0.0
  %943 = vmatprep.subr.mxu0 0.0
  %944 = vmatpush2.msra.mxu0 0.0
  %945 = vmatprep.subr.mxu0 0.0
  %946 = vmatpush2.msra.mxu0 0.0
  %947 = vmatprep.subr.mxu0 0.0
  %948 = vmatpush2.msra.mxu0 0.0
  %949 = vmatprep.subr.mxu0 0.0
  %950 = vmatpush2.msra.mxu0 0.0
  %951 = vmatprep.subr.mxu0 0.0
  %952 = vmatpush2.msra.mxu0 0.0
  %953 = vmatprep.subr.mxu0 0.0
  %954 = vmatpush2.msra.mxu0 0.0
  %955 = vmatprep.subr.mxu0 0.0
  %956 = vmatpush2.msra.mxu0 0.0
  %957 = vmatprep.subr.mxu0 0.0
  %958 = vmatpush2.msra.mxu0 0.0
  %959 = vmatprep.subr.mxu0 0.0
  %960 = vmatpush2.msra.mxu0 0.0
  %961 = vmatprep.subr.mxu0 0.0
  %962 = vmatpush2.msra.mxu0 0.0
  %963 = vmatprep.subr.mxu0 0.0
  %964 = vmatpush2.msra.mxu0 0.0
  %965 = vmatprep.subr.mxu0 0.0
  %966 = vmatpush2.msra.mxu0 0.0
  %967 = vmatprep.mubr.f32.mxu0 0.0
  %968 = vmatmul.mubr.f32.gmra.mxu0 %v901
  %v969 = vpop.f32.mrf.mxu0
  %v970 = vadd.f32 0.0, %v969
  %v971 = vpop.f32.mrf.mxu0
  %v972 = vadd.f32 0.0, %v971
  %973 = vdwg.mxu0
  %s974 = scalar_lea.vmem [#allocation2], 96
  %v975 = vld [vmem:[%s974] sm:$0xff]
  %v976 = vld [vmem:[%s974 + $0x8] sm:$0xff]
  %v977 = vadd.f32 %v975, %v970
  %v978 = vadd.f32 %v976, %v972
  %v979 = vxor.u32 %v977, 2147483648
  %v980 = vmul.f32 %v979, 1.442695
  %v981 = vpow.pop %v980
  %v982 = vadd.f32 %v981, 1.0
  %v983 = vrcp.pop %v982
  %v984 = vmul.f32 1.0, %v983
  %v985 = vtanh.pop %v978
  %v986 = vxor.u32 %v978, 2147483648
  %v987 = vmul.f32 %v986, 1.442695
  %v988 = vpow.pop %v987
  %v989 = vadd.f32 %v988, 1.0
  %v990 = vrcp.pop %v989
  %v991 = vmul.f32 1.0, %v990
  %v992 = vmul.f32 %v984, %v887
  %v993 = vmul.f32 %v984, %v985
  %995 = vrot.lane.b32.xlu0 %v993, 64
  %v996 = vpop.permute.xlu0 %995
  %v998 = vadd.f32 %v992, %v996
  %v999 = vtanh.pop %v998
  %v1000 = vmul.f32 %v991, %v999
  %1002 = vrot.lane.b32.xlu0 %v1000, 64
  %v1003 = vpop.permute.xlu0 %1002
  %s1005 = scalar_lea.vmem [#allocation3], 48
  %1006 = vst.msk [vmem:[%s1005] sm:$0xff] %vm339, %v1003
  %1007 = vrot.lane.b32.xlu0 %v1000, 32
  %v1008 = vpop.permute.xlu0 %1007
  %s1010 = scalar_lea.vmem [#allocation4], 8
  %1011 = vst.msk [vmem:[%s1010] sm:$0xff] %vm339, %v1008
  %v1012 = vsel %vm65, %v1003, 0
  %1014 = vmatprep.subr.mxu0 0.0
  %1015 = vmatpush1.msra.mxu0 0.0
  %1016 = vmatprep.subr.mxu0 0.0
  %1017 = vmatpush1.msra.mxu0 0.0
  %1018 = vmatprep.subr.mxu0 0.0
  %1019 = vmatpush1.msra.mxu0 0.0
  %1020 = vmatprep.subr.mxu0 0.0
  %1021 = vmatpush1.msra.mxu0 0.0
  %1022 = vmatprep.subr.mxu0 0.0
  %1023 = vmatpush1.msra.mxu0 0.0
  %1024 = vmatprep.subr.mxu0 0.0
  %1025 = vmatpush1.msra.mxu0 0.0
  %1026 = vmatprep.subr.mxu0 0.0
  %1027 = vmatpush1.msra.mxu0 0.0
  %1028 = vmatprep.subr.mxu0 0.0
  %1029 = vmatpush1.msra.mxu0 0.0
  %1030 = vmatprep.subr.mxu0 %v234
  %1031 = vmatpush1.msra.mxu0 %v233
  %1032 = vmatprep.subr.mxu0 %v232
  %1033 = vmatpush1.msra.mxu0 %v231
  %1034 = vmatprep.subr.mxu0 %v230
  %1035 = vmatpush1.msra.mxu0 %v229
  %1036 = vmatprep.subr.mxu0 %v228
  %1037 = vmatpush1.msra.mxu0 %v227
  %1038 = vmatprep.subr.mxu0 %v226
  %1039 = vmatpush1.msra.mxu0 %v225
  %1040 = vmatprep.subr.mxu0 %v224
  %1041 = vmatpush1.msra.mxu0 %v223
  %1042 = vmatprep.subr.mxu0 %v222
  %1043 = vmatpush1.msra.mxu0 %v221
  %1044 = vmatprep.subr.mxu0 %v220
  %1045 = vmatpush1.msra.mxu0 %v219
  %1046 = vmatprep.subr.mxu0 0.0
  %1047 = vmatpush2.msra.mxu0 0.0
  %1048 = vmatprep.subr.mxu0 0.0
  %1049 = vmatpush2.msra.mxu0 0.0
  %1050 = vmatprep.subr.mxu0 0.0
  %1051 = vmatpush2.msra.mxu0 0.0
  %1052 = vmatprep.subr.mxu0 0.0
  %1053 = vmatpush2.msra.mxu0 0.0
  %1054 = vmatprep.subr.mxu0 0.0
  %1055 = vmatpush2.msra.mxu0 0.0
  %1056 = vmatprep.subr.mxu0 0.0
  %1057 = vmatpush2.msra.mxu0 0.0
  %1058 = vmatprep.subr.mxu0 0.0
  %1059 = vmatpush2.msra.mxu0 0.0
  %1060 = vmatprep.subr.mxu0 0.0
  %1061 = vmatpush2.msra.mxu0 0.0
  %1062 = vmatprep.subr.mxu0 0.0
  %1063 = vmatpush2.msra.mxu0 0.0
  %1064 = vmatprep.subr.mxu0 0.0
  %1065 = vmatpush2.msra.mxu0 0.0
  %1066 = vmatprep.subr.mxu0 0.0
  %1067 = vmatpush2.msra.mxu0 0.0
  %1068 = vmatprep.subr.mxu0 0.0
  %1069 = vmatpush2.msra.mxu0 0.0
  %1070 = vmatprep.subr.mxu0 0.0
  %1071 = vmatpush2.msra.mxu0 0.0
  %1072 = vmatprep.subr.mxu0 0.0
  %1073 = vmatpush2.msra.mxu0 0.0
  %1074 = vmatprep.subr.mxu0 0.0
  %1075 = vmatpush2.msra.mxu0 0.0
  %1076 = vmatprep.subr.mxu0 0.0
  %1077 = vmatpush2.msra.mxu0 0.0
  %1078 = vmatprep.mubr.f32.mxu0 0.0
  %1079 = vmatmul.mubr.f32.gmra.mxu0 %v1012
  %v1080 = vpop.f32.mrf.mxu0
  %v1081 = vadd.f32 0.0, %v1080
  %v1082 = vpop.f32.mrf.mxu0
  %v1083 = vadd.f32 0.0, %v1082
  %1084 = vdwg.mxu0
  %s1085 = scalar_lea.vmem [#allocation2], 112
  %v1086 = vld [vmem:[%s1085] sm:$0xff]
  %v1087 = vld [vmem:[%s1085 + $0x8] sm:$0xff]
  %v1088 = vadd.f32 %v1086, %v1081
  %v1089 = vadd.f32 %v1087, %v1083
  %v1090 = vxor.u32 %v1088, 2147483648
  %v1091 = vmul.f32 %v1090, 1.442695
  %v1092 = vpow.pop %v1091
  %v1093 = vadd.f32 %v1092, 1.0
  %v1094 = vrcp.pop %v1093
  %v1095 = vmul.f32 1.0, %v1094
  %v1096 = vtanh.pop %v1089
  %v1097 = vxor.u32 %v1089, 2147483648
  %v1098 = vmul.f32 %v1097, 1.442695
  %v1099 = vpow.pop %v1098
  %v1100 = vadd.f32 %v1099, 1.0
  %v1101 = vrcp.pop %v1100
  %v1102 = vmul.f32 1.0, %v1101
  %v1103 = vmul.f32 %v1095, %v998
  %v1104 = vmul.f32 %v1095, %v1096
  %1106 = vrot.lane.b32.xlu0 %v1104, 64
  %v1107 = vpop.permute.xlu0 %1106
  %v1109 = vadd.f32 %v1103, %v1107
  %v1110 = vtanh.pop %v1109
  %v1111 = vmul.f32 %v1102, %v1110
  %1113 = vrot.lane.b32.xlu0 %v1111, 64
  %v1114 = vpop.permute.xlu0 %1113
  %s1116 = scalar_lea.vmem [#allocation3], 56
  %1117 = vst.msk [vmem:[%s1116] sm:$0xff] %vm339, %v1114
  %1118 = vrot.lane.b32.xlu0 %v1111, 32
  %v1119 = vpop.permute.xlu0 %1118
  %1121 = vst.msk [vmem:[#allocation4] sm:$0xff] %vm339, %v1119
  %v1122 = vld [vmem:[#allocation3] sm:$0xff]
  %v1123 = vld [vmem:[#allocation3 + $0x8] sm:$0xff]
  %v1124 = vld [vmem:[#allocation3 + $0x10] sm:$0xff]
  %v1125 = vld [vmem:[#allocation3 + $0x18] sm:$0xff]
  %v1126 = vld [vmem:[#allocation3 + $0x20] sm:$0xff]
  %v1127 = vld [vmem:[#allocation3 + $0x28] sm:$0xff]
  %v1128 = vld [vmem:[#allocation3 + $0x30] sm:$0xff]
  %v1129 = vld [vmem:[#allocation3 + $0x38] sm:$0xff]
  %v1130 = vld [vmem:[#allocation4] sm:$0xff]
  %v1131 = vld [vmem:[#allocation4 + $0x8] sm:$0xff]
  %v1132 = vld [vmem:[#allocation4 + $0x10] sm:$0xff]
  %v1133 = vld [vmem:[#allocation4 + $0x18] sm:$0xff]
  %v1134 = vld [vmem:[#allocation4 + $0x20] sm:$0xff]
  %v1135 = vld [vmem:[#allocation4 + $0x28] sm:$0xff]
  %v1136 = vld [vmem:[#allocation4 + $0x30] sm:$0xff]
  %v1137 = vld [vmem:[#allocation4 + $0x38] sm:$0xff]
  %1146 = vrot.lane.b32.xlu0 %v1130, 32
  %v1147 = vpop.permute.xlu0 %1146
  %1148 = vrot.lane.b32.xlu0 %v1131, 32
  %v1149 = vpop.permute.xlu0 %1148
  %1150 = vrot.lane.b32.xlu0 %v1132, 32
  %v1151 = vpop.permute.xlu0 %1150
  %1152 = vrot.lane.b32.xlu0 %v1133, 32
  %v1153 = vpop.permute.xlu0 %1152
  %1154 = vrot.lane.b32.xlu0 %v1134, 32
  %v1155 = vpop.permute.xlu0 %1154
  %1156 = vrot.lane.b32.xlu0 %v1135, 32
  %v1157 = vpop.permute.xlu0 %1156
  %1158 = vrot.lane.b32.xlu0 %v1136, 32
  %v1159 = vpop.permute.xlu0 %1158
  %1160 = vrot.lane.b32.xlu0 %v1137, 32
  %v1161 = vpop.permute.xlu0 %1160
  %v1170 = vsel %vm339, %v1122, %v1147
  %v1171 = vsel %vm339, %v1123, %v1149
  %v1172 = vsel %vm339, %v1124, %v1151
  %v1173 = vsel %vm339, %v1125, %v1153
  %v1174 = vsel %vm339, %v1126, %v1155
  %v1175 = vsel %vm339, %v1127, %v1157
  %v1176 = vsel %vm339, %v1128, %v1159
  %v1177 = vsel %vm339, %v1129, %v1161
  %v1178 = vsel %vm65, %v1170, 0.0
  %1179 = vadd.xlane.f32.xlu0 %v1178
  %v1180 = vpop.xlane.xlu0 %1179
  %v1181 = vsel %vm65, %v1171, 0.0
  %1182 = vadd.xlane.f32.xlu0 %v1181
  %v1183 = vpop.xlane.xlu0 %1182
  %v1184 = vsel %vm65, %v1172, 0.0
  %1185 = vadd.xlane.f32.xlu0 %v1184
  %v1186 = vpop.xlane.xlu0 %1185
  %v1187 = vsel %vm65, %v1173, 0.0
  %1188 = vadd.xlane.f32.xlu0 %v1187
  %v1189 = vpop.xlane.xlu0 %1188
  %v1190 = vsel %vm65, %v1174, 0.0
  %1191 = vadd.xlane.f32.xlu0 %v1190
  %v1192 = vpop.xlane.xlu0 %1191
  %v1193 = vsel %vm65, %v1175, 0.0
  %1194 = vadd.xlane.f32.xlu0 %v1193
  %v1195 = vpop.xlane.xlu0 %1194
  %v1196 = vsel %vm65, %v1176, 0.0
  %1197 = vadd.xlane.f32.xlu0 %v1196
  %v1198 = vpop.xlane.xlu0 %1197
  %v1199 = vsel %vm65, %v1177, 0.0
  %1200 = vadd.xlane.f32.xlu0 %v1199
  %v1201 = vpop.xlane.xlu0 %1200
  %v1202 = vrcp.pop 64.0
  %v1203 = vmul.f32 %v1180, %v1202
  %v1204 = vmul.f32 %v1183, %v1202
  %v1205 = vmul.f32 %v1186, %v1202
  %v1206 = vmul.f32 %v1189, %v1202
  %v1207 = vmul.f32 %v1192, %v1202
  %v1208 = vmul.f32 %v1195, %v1202
  %v1209 = vmul.f32 %v1198, %v1202
  %v1210 = vmul.f32 %v1201, %v1202
  %v1211 = vsub.f32 %v1170, %v1203
  %v1212 = vsub.f32 %v1171, %v1204
  %v1213 = vsub.f32 %v1172, %v1205
  %v1214 = vsub.f32 %v1173, %v1206
  %v1215 = vsub.f32 %v1174, %v1207
  %v1216 = vsub.f32 %v1175, %v1208
  %v1217 = vsub.f32 %v1176, %v1209
  %v1218 = vsub.f32 %v1177, %v1210
  %v1219 = vmul.f32 %v1211, %v1211
  %v1220 = vmul.f32 %v1212, %v1212
  %v1221 = vmul.f32 %v1213, %v1213
  %v1222 = vmul.f32 %v1214, %v1214
  %v1223 = vmul.f32 %v1215, %v1215
  %v1224 = vmul.f32 %v1216, %v1216
  %v1225 = vmul.f32 %v1217, %v1217
  %v1226 = vmul.f32 %v1218, %v1218
  %v1227 = vsel %vm65, %v1219, 0.0
  %1228 = vadd.xlane.f32.xlu0 %v1227
  %v1229 = vpop.xlane.xlu0 %1228
  %v1230 = vsel %vm65, %v1220, 0.0
  %1231 = vadd.xlane.f32.xlu0 %v1230
  %v1232 = vpop.xlane.xlu0 %1231
  %v1233 = vsel %vm65, %v1221, 0.0
  %1234 = vadd.xlane.f32.xlu0 %v1233
  %v1235 = vpop.xlane.xlu0 %1234
  %v1236 = vsel %vm65, %v1222, 0.0
  %1237 = vadd.xlane.f32.xlu0 %v1236
  %v1238 = vpop.xlane.xlu0 %1237
  %v1239 = vsel %vm65, %v1223, 0.0
  %1240 = vadd.xlane.f32.xlu0 %v1239
  %v1241 = vpop.xlane.xlu0 %1240
  %v1242 = vsel %vm65, %v1224, 0.0
  %1243 = vadd.xlane.f32.xlu0 %v1242
  %v1244 = vpop.xlane.xlu0 %1243
  %v1245 = vsel %vm65, %v1225, 0.0
  %1246 = vadd.xlane.f32.xlu0 %v1245
  %v1247 = vpop.xlane.xlu0 %1246
  %v1248 = vsel %vm65, %v1226, 0.0
  %1249 = vadd.xlane.f32.xlu0 %v1248
  %v1250 = vpop.xlane.xlu0 %1249
  %v1251 = vmul.f32 %v1229, %v1202
  %v1252 = vmul.f32 %v1232, %v1202
  %v1253 = vmul.f32 %v1235, %v1202
  %v1254 = vmul.f32 %v1238, %v1202
  %v1255 = vmul.f32 %v1241, %v1202
  %v1256 = vmul.f32 %v1244, %v1202
  %v1257 = vmul.f32 %v1247, %v1202
  %v1258 = vmul.f32 %v1250, %v1202
  %v1259 = vadd.f32 %v1251, 1e-05
  %v1260 = vadd.f32 %v1252, 1e-05
  %v1261 = vadd.f32 %v1253, 1e-05
  %v1262 = vadd.f32 %v1254, 1e-05
  %v1263 = vadd.f32 %v1255, 1e-05
  %v1264 = vadd.f32 %v1256, 1e-05
  %v1265 = vadd.f32 %v1257, 1e-05
  %v1266 = vadd.f32 %v1258, 1e-05
  %v1267 = vrsqrt.pop %v1259
  %v1268 = vrsqrt.pop %v1260
  %v1269 = vrsqrt.pop %v1261
  %v1270 = vrsqrt.pop %v1262
  %v1271 = vrsqrt.pop %v1263
  %v1272 = vrsqrt.pop %v1264
  %v1273 = vrsqrt.pop %v1265
  %v1274 = vrsqrt.pop %v1266
  %v1275 = vmul.f32 %v1211, %v1267
  %v1276 = vmul.f32 %v1212, %v1268
  %v1277 = vmul.f32 %v1213, %v1269
  %v1278 = vmul.f32 %v1214, %v1270
  %v1279 = vmul.f32 %v1215, %v1271
  %v1280 = vmul.f32 %v1216, %v1272
  %v1281 = vmul.f32 %v1217, %v1273
  %v1282 = vmul.f32 %v1218, %v1274
  %v1283 = vld [vmem:[%s4] sm:$0x1]
  %v1285 = vlaneseq
  %v1286 = vshrl.u32 %v1285, 7
  %v1287 = vsub.s32 0, %v1286
  %v1288 = vrot.slane %v1283, %v1287
  %v1290 = vmul.f32 %v1275, %v1288
  %v1291 = vmul.f32 %v1276, %v1288
  %v1292 = vmul.f32 %v1277, %v1288
  %v1293 = vmul.f32 %v1278, %v1288
  %v1294 = vmul.f32 %v1279, %v1288
  %v1295 = vmul.f32 %v1280, %v1288
  %v1296 = vmul.f32 %v1281, %v1288
  %v1297 = vmul.f32 %v1282, %v1288
  %v1298 = vld [vmem:[%s5] sm:$0x1]
  %v1300 = vlaneseq
  %v1301 = vshrl.u32 %v1300, 7
  %v1302 = vsub.s32 0, %v1301
  %v1303 = vrot.slane %v1298, %v1302
  %v1305 = vadd.f32 %v1290, %v1303
  %v1306 = vadd.f32 %v1291, %v1303
  %v1307 = vadd.f32 %v1292, %v1303
  %v1308 = vadd.f32 %v1293, %v1303
  %v1309 = vadd.f32 %v1294, %v1303
  %v1310 = vadd.f32 %v1295, %v1303
  %v1311 = vadd.f32 %v1296, %v1303
  %v1312 = vadd.f32 %v1297, %v1303
  %v1313 = vld [vmem:[%s6] sm:$0xff]
  %v1314 = vld [vmem:[%s6 + $0x8] sm:$0xff]
  %v1315 = vld [vmem:[%s6 + $0x10] sm:$0xff]
  %v1316 = vld [vmem:[%s6 + $0x18] sm:$0xff]
  %v1317 = vld [vmem:[%s6 + $0x20] sm:$0xff]
  %v1318 = vld [vmem:[%s6 + $0x28] sm:$0xff]
  %v1319 = vld [vmem:[%s6 + $0x30] sm:$0xff]
  %v1320 = vld [vmem:[%s6 + $0x38] sm:$0xff]
  %v1321 = vld [vmem:[%s7] sm:$0x1]
  %v1323 = vlaneseq
  %v1324 = vshrl.u32 %v1323, 7
  %v1325 = vsub.s32 0, %v1324
  %v1326 = vrot.slane %v1321, %v1325
  %v1329 = vsel %vm65, %v1305, 0
  %v1332 = vsel %vm65, %v1306, 0
  %v1335 = vsel %vm65, %v1307, 0
  %v1338 = vsel %vm65, %v1308, 0
  %v1341 = vsel %vm65, %v1309, 0
  %v1344 = vsel %vm65, %v1310, 0
  %v1347 = vsel %vm65, %v1311, 0
  %v1350 = vsel %vm65, %v1312, 0
  %1352 = vmatprep.subr.mxu0 0.0
  %1353 = vmatpush1.msra.mxu0 0.0
  %1354 = vmatprep.subr.mxu0 0.0
  %1355 = vmatpush1.msra.mxu0 0.0
  %1356 = vmatprep.subr.mxu0 0.0
  %1357 = vmatpush1.msra.mxu0 0.0
  %1358 = vmatprep.subr.mxu0 0.0
  %1359 = vmatpush1.msra.mxu0 0.0
  %1360 = vmatprep.subr.mxu0 0.0
  %1361 = vmatpush1.msra.mxu0 0.0
  %1362 = vmatprep.subr.mxu0 0.0
  %1363 = vmatpush1.msra.mxu0 0.0
  %1364 = vmatprep.subr.mxu0 0.0
  %1365 = vmatpush1.msra.mxu0 0.0
  %1366 = vmatprep.subr.mxu0 0.0
  %1367 = vmatpush1.msra.mxu0 0.0
  %1368 = vmatprep.subr.mxu0 0.0
  %1369 = vmatpush1.msra.mxu0 %v1320
  %1370 = vmatprep.subr.mxu0 0.0
  %1371 = vmatpush1.msra.mxu0 %v1319
  %1372 = vmatprep.subr.mxu0 0.0
  %1373 = vmatpush1.msra.mxu0 %v1318
  %1374 = vmatprep.subr.mxu0 0.0
  %1375 = vmatpush1.msra.mxu0 %v1317
  %1376 = vmatprep.subr.mxu0 0.0
  %1377 = vmatpush1.msra.mxu0 %v1316
  %1378 = vmatprep.subr.mxu0 0.0
  %1379 = vmatpush1.msra.mxu0 %v1315
  %1380 = vmatprep.subr.mxu0 0.0
  %1381 = vmatpush1.msra.mxu0 %v1314
  %1382 = vmatprep.subr.mxu0 0.0
  %1383 = vmatpush1.msra.mxu0 %v1313
  %1384 = vmatprep.subr.mxu0 0.0
  %1385 = vmatpush2.msra.mxu0 0.0
  %1386 = vmatprep.subr.mxu0 0.0
  %1387 = vmatpush2.msra.mxu0 0.0
  %1388 = vmatprep.subr.mxu0 0.0
  %1389 = vmatpush2.msra.mxu0 0.0
  %1390 = vmatprep.subr.mxu0 0.0
  %1391 = vmatpush2.msra.mxu0 0.0
  %1392 = vmatprep.subr.mxu0 0.0
  %1393 = vmatpush2.msra.mxu0 0.0
  %1394 = vmatprep.subr.mxu0 0.0
  %1395 = vmatpush2.msra.mxu0 0.0
  %1396 = vmatprep.subr.mxu0 0.0
  %1397 = vmatpush2.msra.mxu0 0.0
  %1398 = vmatprep.subr.mxu0 0.0
  %1399 = vmatpush2.msra.mxu0 0.0
  %1400 = vmatprep.subr.mxu0 0.0
  %1401 = vmatpush2.msra.mxu0 0.0
  %1402 = vmatprep.subr.mxu0 0.0
  %1403 = vmatpush2.msra.mxu0 0.0
  %1404 = vmatprep.subr.mxu0 0.0
  %1405 = vmatpush2.msra.mxu0 0.0
  %1406 = vmatprep.subr.mxu0 0.0
  %1407 = vmatpush2.msra.mxu0 0.0
  %1408 = vmatprep.subr.mxu0 0.0
  %1409 = vmatpush2.msra.mxu0 0.0
  %1410 = vmatprep.subr.mxu0 0.0
  %1411 = vmatpush2.msra.mxu0 0.0
  %1412 = vmatprep.subr.mxu0 0.0
  %1413 = vmatpush2.msra.mxu0 0.0
  %1414 = vmatprep.subr.mxu0 0.0
  %1415 = vmatpush2.msra.mxu0 0.0
  %1416 = vmatprep.mubr.f32.mxu0 0.0
  %1417 = vmatmul.mubr.f32.gmra.mxu0 %v1329
  %v1418 = vpop.f32.mrf.mxu0
  %v1419 = vadd.f32 %v1326, %v1418
  %v1420 = vpop.f32.mrf.mxu0
  %1421 = vmatprep.mubr.f32.mxu0 0.0
  %1422 = vmatmul.mubr.f32.gmra.mxu0 %v1332
  %v1423 = vpop.f32.mrf.mxu0
  %v1424 = vadd.f32 %v1326, %v1423
  %v1425 = vpop.f32.mrf.mxu0
  %1426 = vmatprep.mubr.f32.mxu0 0.0
  %1427 = vmatmul.mubr.f32.gmra.mxu0 %v1335
  %v1428 = vpop.f32.mrf.mxu0
  %v1429 = vadd.f32 %v1326, %v1428
  %v1430 = vpop.f32.mrf.mxu0
  %1431 = vmatprep.mubr.f32.mxu0 0.0
  %1432 = vmatmul.mubr.f32.gmra.mxu0 %v1338
  %v1433 = vpop.f32.mrf.mxu0
  %v1434 = vadd.f32 %v1326, %v1433
  %v1435 = vpop.f32.mrf.mxu0
  %1436 = vmatprep.mubr.f32.mxu0 0.0
  %1437 = vmatmul.mubr.f32.gmra.mxu0 %v1341
  %v1438 = vpop.f32.mrf.mxu0
  %v1439 = vadd.f32 %v1326, %v1438
  %v1440 = vpop.f32.mrf.mxu0
  %1441 = vmatprep.mubr.f32.mxu0 0.0
  %1442 = vmatmul.mubr.f32.gmra.mxu0 %v1344
  %v1443 = vpop.f32.mrf.mxu0
  %v1444 = vadd.f32 %v1326, %v1443
  %v1445 = vpop.f32.mrf.mxu0
  %1446 = vmatprep.mubr.f32.mxu0 0.0
  %1447 = vmatmul.mubr.f32.gmra.mxu0 %v1347
  %v1448 = vpop.f32.mrf.mxu0
  %v1449 = vadd.f32 %v1326, %v1448
  %v1450 = vpop.f32.mrf.mxu0
  %1451 = vmatprep.mubr.f32.mxu0 0.0
  %1452 = vmatmul.mubr.f32.gmra.mxu0 %v1350
  %v1453 = vpop.f32.mrf.mxu0
  %v1454 = vadd.f32 %v1326, %v1453
  %v1455 = vpop.f32.mrf.mxu0
  %1456 = vdwg.mxu0
  %v1457 = vmul.f32 %v1419, 0.5
  %v1458 = vmul.f32 %v1424, 0.5
  %v1459 = vmul.f32 %v1429, 0.5
  %v1460 = vmul.f32 %v1434, 0.5
  %v1461 = vmul.f32 %v1439, 0.5
  %v1462 = vmul.f32 %v1444, 0.5
  %v1463 = vmul.f32 %v1449, 0.5
  %v1464 = vmul.f32 %v1454, 0.5
  %v1465 = vmul.f32 %v1419, 0.70710677
  %v1466 = vmul.f32 %v1424, 0.70710677
  %v1467 = vmul.f32 %v1429, 0.70710677
  %v1468 = vmul.f32 %v1434, 0.70710677
  %v1469 = vmul.f32 %v1439, 0.70710677
  %v1470 = vmul.f32 %v1444, 0.70710677
  %v1471 = vmul.f32 %v1449, 0.70710677
  %v1472 = vmul.f32 %v1454, 0.70710677
  %v1473 = vand.u32 2147483647, %v1465
  %v1474 = vand.u32 2147483647, %v1466
  %v1475 = vand.u32 2147483647, %v1467
  %v1476 = vand.u32 2147483647, %v1468
  %v1477 = vand.u32 2147483647, %v1469
  %v1478 = vand.u32 2147483647, %v1470
  %v1479 = vand.u32 2147483647, %v1471
  %v1480 = vand.u32 2147483647, %v1472
  %v1481 = vmul.f32 %v1473, 0.3275911
  %v1482 = vmul.f32 %v1474, 0.3275911
  %v1483 = vmul.f32 %v1475, 0.3275911
  %v1484 = vmul.f32 %v1476, 0.3275911
  %v1485 = vmul.f32 %v1477, 0.3275911
  %v1486 = vmul.f32 %v1478, 0.3275911
  %v1487 = vmul.f32 %v1479, 0.3275911
  %v1488 = vmul.f32 %v1480, 0.3275911
  %v1489 = vadd.f32 %v1481, 1.0
  %v1490 = vadd.f32 %v1482, 1.0
  %v1491 = vadd.f32 %v1483, 1.0
  %v1492 = vadd.f32 %v1484, 1.0
  %v1493 = vadd.f32 %v1485, 1.0
  %v1494 = vadd.f32 %v1486, 1.0
  %v1495 = vadd.f32 %v1487, 1.0
  %v1496 = vadd.f32 %v1488, 1.0
  %v1497 = vrcp.pop %v1489
  %v1498 = vmul.f32 1.0, %v1497
  %v1499 = vrcp.pop %v1490
  %v1500 = vmul.f32 1.0, %v1499
  %v1501 = vrcp.pop %v1491
  %v1502 = vmul.f32 1.0, %v1501
  %v1503 = vrcp.pop %v1492
  %v1504 = vmul.f32 1.0, %v1503
  %v1505 = vrcp.pop %v1493
  %v1506 = vmul.f32 1.0, %v1505
  %v1507 = vrcp.pop %v1494
  %v1508 = vmul.f32 1.0, %v1507
  %v1509 = vrcp.pop %v1495
  %v1510 = vmul.f32 1.0, %v1509
  %v1511 = vrcp.pop %v1496
  %v1512 = vmul.f32 1.0, %v1511
  %v1513 = vmul.f32 %v1498, 1.0614054
  %v1514 = vmul.f32 %v1500, 1.0614054
  %v1515 = vmul.f32 %v1502, 1.0614054
  %v1516 = vmul.f32 %v1504, 1.0614054
  %v1517 = vmul.f32 %v1506, 1.0614054
  %v1518 = vmul.f32 %v1508, 1.0614054
  %v1519 = vmul.f32 %v1510, 1.0614054
  %v1520 = vmul.f32 %v1512, 1.0614054
  %v1521 = vadd.f32 %v1513, -1.4531521
  %v1522 = vadd.f32 %v1514, -1.4531521
  %v1523 = vadd.f32 %v1515, -1.4531521
  %v1524 = vadd.f32 %v1516, -1.4531521
  %v1525 = vadd.f32 %v1517, -1.4531521
  %v1526 = vadd.f32 %v1518, -1.4531521
  %v1527 = vadd.f32 %v1519, -1.4531521
  %v1528 = vadd.f32 %v1520, -1.4531521
  %v1529 = vmul.f32 %v1521, %v1498
  %v1530 = vmul.f32 %v1522, %v1500
  %v1531 = vmul.f32 %v1523, %v1502
  %v1532 = vmul.f32 %v1524, %v1504
  %v1533 = vmul.f32 %v1525, %v1506
  %v1534 = vmul.f32 %v1526, %v1508
  %v1535 = vmul.f32 %v1527, %v1510
  %v1536 = vmul.f32 %v1528, %v1512
  %v1537 = vadd.f32 %v1529, 1.4214138
  %v1538 = vadd.f32 %v1530, 1.4214138
  %v1539 = vadd.f32 %v1531, 1.4214138
  %v1540 = vadd.f32 %v1532, 1.4214138
  %v1541 = vadd.f32 %v1533, 1.4214138
  %v1542 = vadd.f32 %v1534, 1.4214138
  %v1543 = vadd.f32 %v1535, 1.4214138
  %v1544 = vadd.f32 %v1536, 1.4214138
  %v1545 = vmul.f32 %v1537, %v1498
  %v1546 = vmul.f32 %v1538, %v1500
  %v1547 = vmul.f32 %v1539, %v1502
  %v1548 = vmul.f32 %v1540, %v1504
  %v1549 = vmul.f32 %v1541, %v1506
  %v1550 = vmul.f32 %v1542, %v1508
  %v1551 = vmul.f32 %v1543, %v1510
  %v1552 = vmul.f32 %v1544, %v1512
  %v1553 = vadd.f32 %v1545, -0.28449672
  %v1554 = vadd.f32 %v1546, -0.28449672
  %v1555 = vadd.f32 %v1547, -0.28449672
  %v1556 = vadd.f32 %v1548, -0.28449672
  %v1557 = vadd.f32 %v1549, -0.28449672
  %v1558 = vadd.f32 %v1550, -0.28449672
  %v1559 = vadd.f32 %v1551, -0.28449672
  %v1560 = vadd.f32 %v1552, -0.28449672
  %v1561 = vmul.f32 %v1553, %v1498
  %v1562 = vmul.f32 %v1554, %v1500
  %v1563 = vmul.f32 %v1555, %v1502
  %v1564 = vmul.f32 %v1556, %v1504
  %v1565 = vmul.f32 %v1557, %v1506
  %v1566 = vmul.f32 %v1558, %v1508
  %v1567 = vmul.f32 %v1559, %v1510
  %v1568 = vmul.f32 %v1560, %v1512
  %v1569 = vadd.f32 %v1561, 0.2548296
  %v1570 = vadd.f32 %v1562, 0.2548296
  %v1571 = vadd.f32 %v1563, 0.2548296
  %v1572 = vadd.f32 %v1564, 0.2548296
  %v1573 = vadd.f32 %v1565, 0.2548296
  %v1574 = vadd.f32 %v1566, 0.2548296
  %v1575 = vadd.f32 %v1567, 0.2548296
  %v1576 = vadd.f32 %v1568, 0.2548296
  %v1577 = vmul.f32 %v1569, %v1498
  %v1578 = vmul.f32 %v1570, %v1500
  %v1579 = vmul.f32 %v1571, %v1502
  %v1580 = vmul.f32 %v1572, %v1504
  %v1581 = vmul.f32 %v1573, %v1506
  %v1582 = vmul.f32 %v1574, %v1508
  %v1583 = vmul.f32 %v1575, %v1510
  %v1584 = vmul.f32 %v1576, %v1512
  %v1585 = vsub.f32 0.0, %v1473
  %v1586 = vsub.f32 0.0, %v1474
  %v1587 = vsub.f32 0.0, %v1475
  %v1588 = vsub.f32 0.0, %v1476
  %v1589 = vsub.f32 0.0, %v1477
  %v1590 = vsub.f32 0.0, %v1478
  %v1591 = vsub.f32 0.0, %v1479
  %v1592 = vsub.f32 0.0, %v1480
  %v1593 = vmul.f32 %v1585, %v1473
  %v1594 = vmul.f32 %v1586, %v1474
  %v1595 = vmul.f32 %v1587, %v1475
  %v1596 = vmul.f32 %v1588, %v1476
  %v1597 = vmul.f32 %v1589, %v1477
  %v1598 = vmul.f32 %v1590, %v1478
  %v1599 = vmul.f32 %v1591, %v1479
  %v1600 = vmul.f32 %v1592, %v1480
  %v1601 = vmul.f32 %v1593, 1.442695
  %v1602 = vpow.pop %v1601
  %v1603 = vmul.f32 %v1594, 1.442695
  %v1604 = vpow.pop %v1603
  %v1605 = vmul.f32 %v1595, 1.442695
  %v1606 = vpow.pop %v1605
  %v1607 = vmul.f32 %v1596, 1.442695
  %v1608 = vpow.pop %v1607
  %v1609 = vmul.f32 %v1597, 1.442695
  %v1610 = vpow.pop %v1609
  %v1611 = vmul.f32 %v1598, 1.442695
  %v1612 = vpow.pop %v1611
  %v1613 = vmul.f32 %v1599, 1.442695
  %v1614 = vpow.pop %v1613
  %v1615 = vmul.f32 %v1600, 1.442695
  %v1616 = vpow.pop %v1615
  %v1617 = vmul.f32 %v1577, %v1602
  %v1618 = vmul.f32 %v1578, %v1604
  %v1619 = vmul.f32 %v1579, %v1606
  %v1620 = vmul.f32 %v1580, %v1608
  %v1621 = vmul.f32 %v1581, %v1610
  %v1622 = vmul.f32 %v1582, %v1612
  %v1623 = vmul.f32 %v1583, %v1614
  %v1624 = vmul.f32 %v1584, %v1616
  %v1625 = vsub.f32 1.0, %v1617
  %v1626 = vsub.f32 1.0, %v1618
  %v1627 = vsub.f32 1.0, %v1619
  %v1628 = vsub.f32 1.0, %v1620
  %v1629 = vsub.f32 1.0, %v1621
  %v1630 = vsub.f32 1.0, %v1622
  %v1631 = vsub.f32 1.0, %v1623
  %v1632 = vsub.f32 1.0, %v1624
  %vm1633 = vcmp.ge.f32.partialorder %v1465, 0.0
  %vm1634 = vcmp.ge.f32.partialorder %v1466, 0.0
  %vm1635 = vcmp.ge.f32.partialorder %v1467, 0.0
  %vm1636 = vcmp.ge.f32.partialorder %v1468, 0.0
  %vm1637 = vcmp.ge.f32.partialorder %v1469, 0.0
  %vm1638 = vcmp.ge.f32.partialorder %v1470, 0.0
  %vm1639 = vcmp.ge.f32.partialorder %v1471, 0.0
  %vm1640 = vcmp.ge.f32.partialorder %v1472, 0.0
  %v1641 = vsub.f32 0.0, %v1625
  %v1642 = vsub.f32 0.0, %v1626
  %v1643 = vsub.f32 0.0, %v1627
  %v1644 = vsub.f32 0.0, %v1628
  %v1645 = vsub.f32 0.0, %v1629
  %v1646 = vsub.f32 0.0, %v1630
  %v1647 = vsub.f32 0.0, %v1631
  %v1648 = vsub.f32 0.0, %v1632
  %v1649 = vsel %vm1633, %v1625, %v1641
  %v1650 = vsel %vm1634, %v1626, %v1642
  %v1651 = vsel %vm1635, %v1627, %v1643
  %v1652 = vsel %vm1636, %v1628, %v1644
  %v1653 = vsel %vm1637, %v1629, %v1645
  %v1654 = vsel %vm1638, %v1630, %v1646
  %v1655 = vsel %vm1639, %v1631, %v1647
  %v1656 = vsel %vm1640, %v1632, %v1648
  %v1657 = vadd.f32 %v1649, 1.0
  %v1658 = vadd.f32 %v1650, 1.0
  %v1659 = vadd.f32 %v1651, 1.0
  %v1660 = vadd.f32 %v1652, 1.0
  %v1661 = vadd.f32 %v1653, 1.0
  %v1662 = vadd.f32 %v1654, 1.0
  %v1663 = vadd.f32 %v1655, 1.0
  %v1664 = vadd.f32 %v1656, 1.0
  %v1665 = vmul.f32 %v1457, %v1657
  %v1666 = vmul.f32 %v1458, %v1658
  %v1667 = vmul.f32 %v1459, %v1659
  %v1668 = vmul.f32 %v1460, %v1660
  %v1669 = vmul.f32 %v1461, %v1661
  %v1670 = vmul.f32 %v1462, %v1662
  %v1671 = vmul.f32 %v1463, %v1663
  %v1672 = vmul.f32 %v1464, %v1664
  %v1673 = vld [vmem:[%s0] sm:$0xff]
  %v1674 = vld [vmem:[%s0 + $0x8] sm:$0xff]
  %v1675 = vld [vmem:[%s0 + $0x10] sm:$0xff]
  %v1676 = vld [vmem:[%s0 + $0x18] sm:$0xff]
  %v1677 = vld [vmem:[%s0 + $0x20] sm:$0xff]
  %v1678 = vld [vmem:[%s0 + $0x28] sm:$0xff]
  %v1679 = vld [vmem:[%s0 + $0x30] sm:$0xff]
  %v1680 = vld [vmem:[%s0 + $0x38] sm:$0xff]
  %v1681 = vadd.f32 %v1665, %v1673
  %v1682 = vadd.f32 %v1666, %v1674
  %v1683 = vadd.f32 %v1667, %v1675
  %v1684 = vadd.f32 %v1668, %v1676
  %v1685 = vadd.f32 %v1669, %v1677
  %v1686 = vadd.f32 %v1670, %v1678
  %v1687 = vadd.f32 %v1671, %v1679
  %v1688 = vadd.f32 %v1672, %v1680
  %1689 = vst.msk [vmem:[%s8] sm:$0xff] %vm339, %v1681
  %1690 = vst.msk [vmem:[%s8 + $0x8] sm:$0xff] %vm339, %v1682
  %1691 = vst.msk [vmem:[%s8 + $0x10] sm:$0xff] %vm339, %v1683
  %1692 = vst.msk [vmem:[%s8 + $0x18] sm:$0xff] %vm339, %v1684
  %1693 = vst.msk [vmem:[%s8 + $0x20] sm:$0xff] %vm339, %v1685
  %1694 = vst.msk [vmem:[%s8 + $0x28] sm:$0xff] %vm339, %v1686
  %1695 = vst.msk [vmem:[%s8 + $0x30] sm:$0xff] %vm339, %v1687
  %1696 = vst.msk [vmem:[%s8 + $0x38] sm:$0xff] %vm339, %v1688
  // Predicated region
  $region34: #{lstm_bi_forward.1} parent=0 // pred_check
    _
  $region35: #{lstm_bi_forward.1} parent=0 // pred_check_branch
    %1698 = sbr.rel (0) target = $region37
  $region36: #{lstm_bi_forward.1} parent=0 // pred_region
    _
  $region37: #{lstm_bi_forward.1} parent=0 // pred_fallthru
    _
  // Predicated region
  $region38: #{lstm_bi_forward.1} parent=0 // pred_check
    _
  $region39: #{lstm_bi_forward.1} parent=0 // pred_check_branch
    %1700 = sbr.rel (0) target = $region41
  $region40: #{lstm_bi_forward.1} parent=0 // pred_region
    _
  $region41: #{lstm_bi_forward.1} parent=0 // pred_fallthru
    _

</llo_original>
